<compile_context>
chip_gen: v7x
topology: tpu7x:2x2x1
jax: 0.10.0
libtpu: 0.0.40
codegen_flags: <defaults>
</compile_context>

<pallas_src>
import jax
import jax.numpy as jnp
from jax import lax
from jax.experimental import pallas as pl
from jax.experimental.pallas import tpu as pltpu


def _lstm_bidir_sum_kernel(x2d_ref, h0_ref, c0_ref, ucat_ref, bias_ref,
                           wf_ref, wb_ref, out_ref, gx_ref, hb_ref):
    b = h0_ref.shape[0]              # padded batch (multiple of 8)
    H = h0_ref.shape[1]
    seq = out_ref.shape[0] // b
    H2, H3, H4 = 2 * H, 3 * H, 4 * H

    # ---- Input projection for BOTH directions as one big MXU matmul,
    #      biases pre-folded and broadcast exactly once (off the critical chain).
    gx_ref[...] = (jnp.dot(x2d_ref[...], ucat_ref[...],
                           preferred_element_type=jnp.float32)
                   + bias_ref[...])

    wf = wf_ref[...]                 # (H, 4H) forward recurrent weights
    wb = wb_ref[...]                 # (H, 4H) backward recurrent weights
    h0 = h0_ref[...]
    c0 = c0_ref[...]
    mm_dtype = wf.dtype              # matmul operand dtype (f32 or bf16)

    def cell(gates, c):
        # sigmoid over the contiguous [f | i] 2H block; tanh on g.
        fi = jax.nn.sigmoid(gates[:, :H2])
        c_new = c * fi[:, :H] + fi[:, H:] * jnp.tanh(gates[:, H2:H3])
        # NOTE: reference module applies NO sigmoid to o_t -- reproduced exactly.
        h_new = gates[:, H3:] * jnp.tanh(c_new)
        return h_new, c_new

    def body(t, carry):
        hf, cf, hb, cb = carry
        row_f = pl.multiple_of(t * b, b)
        row_b = pl.multiple_of((seq - 1 - t) * b, b)
        # only the tiny h @ W matmul remains on the serial dependency chain
        g_f = gx_ref[pl.ds(row_f, b), :H4] + jnp.dot(
            hf.astype(mm_dtype), wf, preferred_element_type=jnp.float32)
        g_b = gx_ref[pl.ds(row_b, b), H4:] + jnp.dot(
            hb.astype(mm_dtype), wb, preferred_element_type=jnp.float32)
        hf, cf = cell(g_f, cf)
        hb, cb = cell(g_b, cb)
        out_ref[pl.ds(row_f, b), :] = hf          # forward hidden states
        hb_ref[pl.ds(row_b, b), :] = hb           # backward hidden states (scratch)
        return (hf, cf, hb, cb)

    lax.fori_loop(0, seq, body, (h0, c0, h0, c0),
                  unroll=True if seq <= 32 else 8)

    # mode='sum': single vectorized accumulation of the backward direction.
    out_ref[...] = out_ref[...] + hb_ref[...]


def lstm_layer_forward(x, hidden_state, cell_state, params,
                       *, matmul_dtype=jnp.float32):
    """x: (b, seq, input_size); hidden_state, cell_state: (b, hidden_size).

    Returns (out, hidden_state, cell_state) matching the PyTorch module with
    mode='sum' (the original hidden/cell states are returned unchanged).
    """
    b, seq_len, E = x.shape
    H = hidden_state.shape[1]
    b_pad = max(8, ((b + 7) // 8) * 8)            # fill the sublane dimension

    # Time-major, batch padded, flattened so the input projection is one matmul.
    x_tm = jnp.transpose(x, (1, 0, 2)).astype(jnp.float32)      # (seq, b, E)
    x_tm = jnp.pad(x_tm, ((0, 0), (0, b_pad - b), (0, 0)))
    x2d = x_tm.reshape(seq_len * b_pad, E)

    h0 = jnp.pad(hidden_state.astype(jnp.float32), ((0, b_pad - b), (0, 0)))
    c0 = jnp.pad(cell_state.astype(jnp.float32), ((0, b_pad - b), (0, 0)))

    # Concatenate the two input projections; fold the two bias vectors per dir.
    u_cat = jnp.concatenate([params["U_f_w"], params["U_b_w"]], axis=1)      # (E, 8H)
    bias_cat = jnp.concatenate([params["U_f_b"] + params["W_f_b"],
                                params["U_b_b"] + params["W_b_b"]], axis=1)  # (1, 8H)
    wf = params["W_f_w"]                                                     # (H, 4H)
    wb = params["W_b_w"]                                                     # (H, 4H)

    # bf16 matmul operands double MXU throughput; accumulation stays f32.
    x2d = x2d.astype(matmul_dtype)
    u_cat = u_cat.astype(matmul_dtype)
    wf = wf.astype(matmul_dtype)
    wb = wb.astype(matmul_dtype)

    vmem = pl.BlockSpec(memory_space=pltpu.MemorySpace.VMEM)

    out2d = pl.pallas_call(
        _lstm_bidir_sum_kernel,
        out_shape=jax.ShapeDtypeStruct((seq_len * b_pad, H), jnp.float32),
        in_specs=[vmem] * 7,
        out_specs=vmem,
        scratch_shapes=[
            pltpu.VMEM((seq_len * b_pad, 8 * H), jnp.float32),   # gx: input proj
            pltpu.VMEM((seq_len * b_pad, H), jnp.float32),       # backward hiddens
        ],
        compiler_params=pltpu.CompilerParams(vmem_limit_bytes=32 * 1024 * 1024),
    )(x2d, h0, c0, u_cat, bias_cat, wf, wb)

    out = out2d.reshape(seq_len, b_pad, H)[:, :b, :]
    out = jnp.transpose(out, (1, 0, 2))                          # (b, seq, H)
    return out, hidden_state, cell_state


def init_params(key, input_size, hidden_size):
    """Deterministic synthetic parameters. Weights stored as (in, out); bias as (1, out)."""
    ks = jax.random.split(key, 8)

    def lin(kw, kb, fan_in, fan_out):
        bound = 1.0 / jnp.sqrt(fan_in)
        w = jax.random.uniform(kw, (fan_in, fan_out), jnp.float32, -bound, bound)
        b = jax.random.uniform(kb, (1, fan_out), jnp.float32, -bound, bound)
        return w, b

    H4 = hidden_size * 4
    ufw, ufb = lin(ks[0], ks[1], input_size, H4)
    wfw, wfb = lin(ks[2], ks[3], hidden_size, H4)
    ubw, ubb = lin(ks[4], ks[5], input_size, H4)
    wbw, wbb = lin(ks[6], ks[7], hidden_size, H4)
    return {
        "U_f_w": ufw, "U_f_b": ufb, "W_f_w": wfw, "W_f_b": wfb,
        "U_b_w": ubw, "U_b_b": ubb, "W_b_w": wbw, "W_b_b": wbb,
    }


def _reference_forward(x, h0, c0, params, hidden_size):
    """Pure-JAX reference mirroring the PyTorch loop, for correctness check."""
    b, seq_len, _ = x.shape
    H = hidden_size

    def step(x_t, h, c, uw, ub, ww, wb):
        g = x_t @ uw + ub + h @ ww + wb
        f_t, i_t, g_t, o_t = g[:, :H], g[:, H:2 * H], g[:, 2 * H:3 * H], g[:, 3 * H:]
        c = c * jax.nn.sigmoid(f_t) + jax.nn.sigmoid(i_t) * jnp.tanh(g_t)
        h = o_t * jnp.tanh(c)          # o_t raw, like the reference module
        return h, c

    out_f = []
    h, c = h0, c0
    for t in range(seq_len):
        h, c = step(x[:, t, :], h, c, params["U_f_w"], params["U_f_b"],
                    params["W_f_w"], params["W_f_b"])
        out_f.append(h)
    out_b = [None] * seq_len
    h, c = h0, c0
    for t in reversed(range(seq_len)):
        h, c = step(x[:, t, :], h, c, params["U_b_w"], params["U_b_b"],
                    params["W_b_w"], params["W_b_b"])
        out_b[t] = h
    return jnp.stack(out_f, axis=1) + jnp.stack(out_b, axis=1)


if __name__ == "__main__":
    batch = 2
    seq_len = 8
    input_size = 16
    hidden_size = 32

    key = jax.random.PRNGKey(0)
    k_x, k_p = jax.random.split(key)

    x = jax.random.normal(k_x, (batch, seq_len, input_size), jnp.float32)
    hidden_state = jnp.zeros((batch, hidden_size), jnp.float32)  # init_zero_hidden
    cell_state = jnp.zeros((batch, hidden_size), jnp.float32)    # init_zero_cell
    params = init_params(k_p, input_size, hidden_size)

    ref = _reference_forward(x, hidden_state, cell_state, params, hidden_size)

    # f32 matmuls: tight check against the pure-JAX reference.
    out, h_ret, c_ret = lstm_layer_forward(x, hidden_state, cell_state, params)
    out = jax.block_until_ready(out)
    assert out.shape == (batch, seq_len, hidden_size)
    assert jnp.allclose(out, ref, atol=1e-5, rtol=1e-5)
    assert jnp.array_equal(h_ret, hidden_state) and jnp.array_equal(c_ret, cell_state)

    # bf16 matmul operands (f32 accumulate, f32 cell/activation math): loose check.
    out_bf16, _, _ = lstm_layer_forward(x, hidden_state, cell_state, params,
                                        matmul_dtype=jnp.bfloat16)
    out_bf16 = jax.block_until_ready(out_bf16)
    assert jnp.allclose(out_bf16, ref, atol=1e-1, rtol=1e-1)

    print("KERNEL_OK")
</pallas_src>

<mosaic_0001>
module attributes {stable_mosaic.version = 11 : i64} {
  func.func @_lstm_bidir_sum_kernel(%arg0: memref<64x16xf32, #tpu.memory_space<vmem>>, %arg1: memref<8x32xf32, #tpu.memory_space<vmem>>, %arg2: memref<8x32xf32, #tpu.memory_space<vmem>>, %arg3: memref<16x256xf32, #tpu.memory_space<vmem>>, %arg4: memref<1x256xf32, #tpu.memory_space<vmem>>, %arg5: memref<32x128xf32, #tpu.memory_space<vmem>>, %arg6: memref<32x128xf32, #tpu.memory_space<vmem>>, %arg7: memref<64x32xf32, #tpu.memory_space<vmem>>, %arg8: memref<64x256xf32, #tpu.memory_space<vmem>>, %arg9: memref<64x32xf32, #tpu.memory_space<vmem>>) attributes {dimension_semantics = [], scalar_prefetch = 0 : i64, scratch_operands = 2 : i64, tpu.core_type = #tpu.core_type<tc>} {
    %c0 = arith.constant 0 : index
    %c0_0 = arith.constant 0 : index
    %0 = vector.load %arg0[%c0, %c0_0] : memref<64x16xf32, #tpu.memory_space<vmem>>, vector<64x16xf32>
    %c0_1 = arith.constant 0 : index
    %c0_2 = arith.constant 0 : index
    %1 = vector.load %arg3[%c0_1, %c0_2] : memref<16x256xf32, #tpu.memory_space<vmem>>, vector<16x256xf32>
    %cst = arith.constant dense<0.000000e+00> : vector<64x256xf32>
    %2 = tpu.matmul %0, %1, %cst {dimension_numbers = #tpu.dot_dimension_numbers<[1], [0], [0], [1], [0, 0, 1, 1], [], []>} : vector<64x16xf32>, vector<16x256xf32>, vector<64x256xf32> -> vector<64x256xf32>
    %c0_3 = arith.constant 0 : index
    %c0_4 = arith.constant 0 : index
    %3 = vector.load %arg4[%c0_3, %c0_4] : memref<1x256xf32, #tpu.memory_space<vmem>>, vector<1x256xf32>
    %4 = vector.broadcast %3 : vector<1x256xf32> to vector<64x256xf32>
    %5 = arith.addf %2, %4 : vector<64x256xf32>
    %c0_5 = arith.constant 0 : index
    %c0_6 = arith.constant 0 : index
    %6 = vector.load %arg8[%c0_5, %c0_6] : memref<64x256xf32, #tpu.memory_space<vmem>>, vector<64x256xf32>
    tpu.vector_store %arg8[%c0_5, %c0_6], %5 {strides = array<i32>} : memref<64x256xf32, #tpu.memory_space<vmem>>, vector<64x256xf32>,
    %c0_7 = arith.constant 0 : index
    %c0_8 = arith.constant 0 : index
    %7 = vector.load %arg5[%c0_7, %c0_8] : memref<32x128xf32, #tpu.memory_space<vmem>>, vector<32x128xf32>
    %c0_9 = arith.constant 0 : index
    %c0_10 = arith.constant 0 : index
    %8 = vector.load %arg6[%c0_9, %c0_10] : memref<32x128xf32, #tpu.memory_space<vmem>>, vector<32x128xf32>
    %c0_11 = arith.constant 0 : index
    %c0_12 = arith.constant 0 : index
    %9 = vector.load %arg1[%c0_11, %c0_12] : memref<8x32xf32, #tpu.memory_space<vmem>>, vector<8x32xf32>
    %c0_13 = arith.constant 0 : index
    %c0_14 = arith.constant 0 : index
    %10 = vector.load %arg2[%c0_13, %c0_14] : memref<8x32xf32, #tpu.memory_space<vmem>>, vector<8x32xf32>
    %c0_i32 = arith.constant 0 : i32
    %c8_i32 = arith.constant 8 : i32
    %11 = arith.muli %c0_i32, %c8_i32 : i32
    %12 = tpu.assume_multiple %11, 8 : i32
    %c7_i32 = arith.constant 7 : i32
    %13 = arith.subi %c7_i32, %c0_i32 : i32
    %c8_i32_15 = arith.constant 8 : i32
    %14 = arith.muli %13, %c8_i32_15 : i32
    %15 = tpu.assume_multiple %14, 8 : i32
    %16 = arith.index_cast %12 : i32 to index
    %c0_16 = arith.constant 0 : index
    %17 = vector.load %arg8[%16, %c0_16] : memref<64x256xf32, #tpu.memory_space<vmem>>, vector<8x128xf32>
    %cst_17 = arith.constant dense<0.000000e+00> : vector<8x128xf32>
    %18 = tpu.matmul %9, %7, %cst_17 {dimension_numbers = #tpu.dot_dimension_numbers<[1], [0], [0], [1], [0, 0, 1, 1], [], []>} : vector<8x32xf32>, vector<32x128xf32>, vector<8x128xf32> -> vector<8x128xf32>
    %19 = arith.addf %17, %18 : vector<8x128xf32>
    %20 = arith.index_cast %15 : i32 to index
    %c128 = arith.constant 128 : index
    %21 = vector.load %arg8[%20, %c128] : memref<64x256xf32, #tpu.memory_space<vmem>>, vector<8x128xf32>
    %cst_18 = arith.constant dense<0.000000e+00> : vector<8x128xf32>
    %22 = tpu.matmul %9, %8, %cst_18 {dimension_numbers = #tpu.dot_dimension_numbers<[1], [0], [0], [1], [0, 0, 1, 1], [], []>} : vector<8x32xf32>, vector<32x128xf32>, vector<8x128xf32> -> vector<8x128xf32>
    %23 = arith.addf %21, %22 : vector<8x128xf32>
    %24 = vector.extract_strided_slice %19 {offsets = [0, 0], sizes = [8, 64], strides = [1, 1]} : vector<8x128xf32> to vector<8x64xf32>
    %25 = arith.negf %24 : vector<8x64xf32>
    %26 = math.exp %25 : vector<8x64xf32>
    %cst_19 = arith.constant 1.000000e+00 : f32
    %27 = vector.broadcast %cst_19 : f32 to vector<8x64xf32>
    %28 = arith.addf %27, %26 : vector<8x64xf32>
    %29 = arith.divf %27, %28 : vector<8x64xf32>
    %30 = vector.extract_strided_slice %29 {offsets = [0, 0], sizes = [8, 32], strides = [1, 1]} : vector<8x64xf32> to vector<8x32xf32>
    %31 = arith.mulf %10, %30 : vector<8x32xf32>
    %32 = vector.extract_strided_slice %29 {offsets = [0, 32], sizes = [8, 32], strides = [1, 1]} : vector<8x64xf32> to vector<8x32xf32>
    %33 = vector.extract_strided_slice %19 {offsets = [0, 64], sizes = [8, 32], strides = [1, 1]} : vector<8x128xf32> to vector<8x32xf32>
    %34 = math.tanh %33 : vector<8x32xf32>
    %35 = arith.mulf %32, %34 : vector<8x32xf32>
    %36 = arith.addf %31, %35 : vector<8x32xf32>
    %37 = vector.extract_strided_slice %19 {offsets = [0, 96], sizes = [8, 32], strides = [1, 1]} : vector<8x128xf32> to vector<8x32xf32>
    %38 = math.tanh %36 : vector<8x32xf32>
    %39 = arith.mulf %37, %38 : vector<8x32xf32>
    %40 = vector.extract_strided_slice %23 {offsets = [0, 0], sizes = [8, 64], strides = [1, 1]} : vector<8x128xf32> to vector<8x64xf32>
    %41 = arith.negf %40 : vector<8x64xf32>
    %42 = math.exp %41 : vector<8x64xf32>
    %cst_20 = arith.constant 1.000000e+00 : f32
    %43 = vector.broadcast %cst_20 : f32 to vector<8x64xf32>
    %44 = arith.addf %43, %42 : vector<8x64xf32>
    %45 = arith.divf %43, %44 : vector<8x64xf32>
    %46 = vector.extract_strided_slice %45 {offsets = [0, 0], sizes = [8, 32], strides = [1, 1]} : vector<8x64xf32> to vector<8x32xf32>
    %47 = arith.mulf %10, %46 : vector<8x32xf32>
    %48 = vector.extract_strided_slice %45 {offsets = [0, 32], sizes = [8, 32], strides = [1, 1]} : vector<8x64xf32> to vector<8x32xf32>
    %49 = vector.extract_strided_slice %23 {offsets = [0, 64], sizes = [8, 32], strides = [1, 1]} : vector<8x128xf32> to vector<8x32xf32>
    %50 = math.tanh %49 : vector<8x32xf32>
    %51 = arith.mulf %48, %50 : vector<8x32xf32>
    %52 = arith.addf %47, %51 : vector<8x32xf32>
    %53 = vector.extract_strided_slice %23 {offsets = [0, 96], sizes = [8, 32], strides = [1, 1]} : vector<8x128xf32> to vector<8x32xf32>
    %54 = math.tanh %52 : vector<8x32xf32>
    %55 = arith.mulf %53, %54 : vector<8x32xf32>
    %56 = arith.index_cast %12 : i32 to index
    %c0_21 = arith.constant 0 : index
    %57 = vector.load %arg7[%56, %c0_21] : memref<64x32xf32, #tpu.memory_space<vmem>>, vector<8x32xf32>
    tpu.vector_store %arg7[%56, %c0_21], %39 {strides = array<i32>} : memref<64x32xf32, #tpu.memory_space<vmem>>, vector<8x32xf32>,
    %58 = arith.index_cast %15 : i32 to index
    %c0_22 = arith.constant 0 : index
    %59 = vector.load %arg9[%58, %c0_22] : memref<64x32xf32, #tpu.memory_space<vmem>>, vector<8x32xf32>
    tpu.vector_store %arg9[%58, %c0_22], %55 {strides = array<i32>} : memref<64x32xf32, #tpu.memory_space<vmem>>, vector<8x32xf32>,
    %c1_i32 = arith.constant 1 : i32
    %c8_i32_23 = arith.constant 8 : i32
    %60 = arith.muli %c1_i32, %c8_i32_23 : i32
    %61 = tpu.assume_multiple %60, 8 : i32
    %c7_i32_24 = arith.constant 7 : i32
    %62 = arith.subi %c7_i32_24, %c1_i32 : i32
    %c8_i32_25 = arith.constant 8 : i32
    %63 = arith.muli %62, %c8_i32_25 : i32
    %64 = tpu.assume_multiple %63, 8 : i32
    %65 = arith.index_cast %61 : i32 to index
    %c0_26 = arith.constant 0 : index
    %66 = vector.load %arg8[%65, %c0_26] : memref<64x256xf32, #tpu.memory_space<vmem>>, vector<8x128xf32>
    %cst_27 = arith.constant dense<0.000000e+00> : vector<8x128xf32>
    %67 = tpu.matmul %39, %7, %cst_27 {dimension_numbers = #tpu.dot_dimension_numbers<[1], [0], [0], [1], [0, 0, 1, 1], [], []>} : vector<8x32xf32>, vector<32x128xf32>, vector<8x128xf32> -> vector<8x128xf32>
    %68 = arith.addf %66, %67 : vector<8x128xf32>
    %69 = arith.index_cast %64 : i32 to index
    %c128_28 = arith.constant 128 : index
    %70 = vector.load %arg8[%69, %c128_28] : memref<64x256xf32, #tpu.memory_space<vmem>>, vector<8x128xf32>
    %cst_29 = arith.constant dense<0.000000e+00> : vector<8x128xf32>
    %71 = tpu.matmul %55, %8, %cst_29 {dimension_numbers = #tpu.dot_dimension_numbers<[1], [0], [0], [1], [0, 0, 1, 1], [], []>} : vector<8x32xf32>, vector<32x128xf32>, vector<8x128xf32> -> vector<8x128xf32>
    %72 = arith.addf %70, %71 : vector<8x128xf32>
    %73 = vector.extract_strided_slice %68 {offsets = [0, 0], sizes = [8, 64], strides = [1, 1]} : vector<8x128xf32> to vector<8x64xf32>
    %74 = arith.negf %73 : vector<8x64xf32>
    %75 = math.exp %74 : vector<8x64xf32>
    %cst_30 = arith.constant 1.000000e+00 : f32
    %76 = vector.broadcast %cst_30 : f32 to vector<8x64xf32>
    %77 = arith.addf %76, %75 : vector<8x64xf32>
    %78 = arith.divf %76, %77 : vector<8x64xf32>
    %79 = vector.extract_strided_slice %78 {offsets = [0, 0], sizes = [8, 32], strides = [1, 1]} : vector<8x64xf32> to vector<8x32xf32>
    %80 = arith.mulf %36, %79 : vector<8x32xf32>
    %81 = vector.extract_strided_slice %78 {offsets = [0, 32], sizes = [8, 32], strides = [1, 1]} : vector<8x64xf32> to vector<8x32xf32>
    %82 = vector.extract_strided_slice %68 {offsets = [0, 64], sizes = [8, 32], strides = [1, 1]} : vector<8x128xf32> to vector<8x32xf32>
    %83 = math.tanh %82 : vector<8x32xf32>
    %84 = arith.mulf %81, %83 : vector<8x32xf32>
    %85 = arith.addf %80, %84 : vector<8x32xf32>
    %86 = vector.extract_strided_slice %68 {offsets = [0, 96], sizes = [8, 32], strides = [1, 1]} : vector<8x128xf32> to vector<8x32xf32>
    %87 = math.tanh %85 : vector<8x32xf32>
    %88 = arith.mulf %86, %87 : vector<8x32xf32>
    %89 = vector.extract_strided_slice %72 {offsets = [0, 0], sizes = [8, 64], strides = [1, 1]} : vector<8x128xf32> to vector<8x64xf32>
    %90 = arith.negf %89 : vector<8x64xf32>
    %91 = math.exp %90 : vector<8x64xf32>
    %cst_31 = arith.constant 1.000000e+00 : f32
    %92 = vector.broadcast %cst_31 : f32 to vector<8x64xf32>
    %93 = arith.addf %92, %91 : vector<8x64xf32>
    %94 = arith.divf %92, %93 : vector<8x64xf32>
    %95 = vector.extract_strided_slice %94 {offsets = [0, 0], sizes = [8, 32], strides = [1, 1]} : vector<8x64xf32> to vector<8x32xf32>
    %96 = arith.mulf %52, %95 : vector<8x32xf32>
    %97 = vector.extract_strided_slice %94 {offsets = [0, 32], sizes = [8, 32], strides = [1, 1]} : vector<8x64xf32> to vector<8x32xf32>
    %98 = vector.extract_strided_slice %72 {offsets = [0, 64], sizes = [8, 32], strides = [1, 1]} : vector<8x128xf32> to vector<8x32xf32>
    %99 = math.tanh %98 : vector<8x32xf32>
    %100 = arith.mulf %97, %99 : vector<8x32xf32>
    %101 = arith.addf %96, %100 : vector<8x32xf32>
    %102 = vector.extract_strided_slice %72 {offsets = [0, 96], sizes = [8, 32], strides = [1, 1]} : vector<8x128xf32> to vector<8x32xf32>
    %103 = math.tanh %101 : vector<8x32xf32>
    %104 = arith.mulf %102, %103 : vector<8x32xf32>
    %105 = arith.index_cast %61 : i32 to index
    %c0_32 = arith.constant 0 : index
    %106 = vector.load %arg7[%105, %c0_32] : memref<64x32xf32, #tpu.memory_space<vmem>>, vector<8x32xf32>
    tpu.vector_store %arg7[%105, %c0_32], %88 {strides = array<i32>} : memref<64x32xf32, #tpu.memory_space<vmem>>, vector<8x32xf32>,
    %107 = arith.index_cast %64 : i32 to index
    %c0_33 = arith.constant 0 : index
    %108 = vector.load %arg9[%107, %c0_33] : memref<64x32xf32, #tpu.memory_space<vmem>>, vector<8x32xf32>
    tpu.vector_store %arg9[%107, %c0_33], %104 {strides = array<i32>} : memref<64x32xf32, #tpu.memory_space<vmem>>, vector<8x32xf32>,
    %c2_i32 = arith.constant 2 : i32
    %c8_i32_34 = arith.constant 8 : i32
    %109 = arith.muli %c2_i32, %c8_i32_34 : i32
    %110 = tpu.assume_multiple %109, 8 : i32
    %c7_i32_35 = arith.constant 7 : i32
    %111 = arith.subi %c7_i32_35, %c2_i32 : i32
    %c8_i32_36 = arith.constant 8 : i32
    %112 = arith.muli %111, %c8_i32_36 : i32
    %113 = tpu.assume_multiple %112, 8 : i32
    %114 = arith.index_cast %110 : i32 to index
    %c0_37 = arith.constant 0 : index
    %115 = vector.load %arg8[%114, %c0_37] : memref<64x256xf32, #tpu.memory_space<vmem>>, vector<8x128xf32>
    %cst_38 = arith.constant dense<0.000000e+00> : vector<8x128xf32>
    %116 = tpu.matmul %88, %7, %cst_38 {dimension_numbers = #tpu.dot_dimension_numbers<[1], [0], [0], [1], [0, 0, 1, 1], [], []>} : vector<8x32xf32>, vector<32x128xf32>, vector<8x128xf32> -> vector<8x128xf32>
    %117 = arith.addf %115, %116 : vector<8x128xf32>
    %118 = arith.index_cast %113 : i32 to index
    %c128_39 = arith.constant 128 : index
    %119 = vector.load %arg8[%118, %c128_39] : memref<64x256xf32, #tpu.memory_space<vmem>>, vector<8x128xf32>
    %cst_40 = arith.constant dense<0.000000e+00> : vector<8x128xf32>
    %120 = tpu.matmul %104, %8, %cst_40 {dimension_numbers = #tpu.dot_dimension_numbers<[1], [0], [0], [1], [0, 0, 1, 1], [], []>} : vector<8x32xf32>, vector<32x128xf32>, vector<8x128xf32> -> vector<8x128xf32>
    %121 = arith.addf %119, %120 : vector<8x128xf32>
    %122 = vector.extract_strided_slice %117 {offsets = [0, 0], sizes = [8, 64], strides = [1, 1]} : vector<8x128xf32> to vector<8x64xf32>
    %123 = arith.negf %122 : vector<8x64xf32>
    %124 = math.exp %123 : vector<8x64xf32>
    %cst_41 = arith.constant 1.000000e+00 : f32
    %125 = vector.broadcast %cst_41 : f32 to vector<8x64xf32>
    %126 = arith.addf %125, %124 : vector<8x64xf32>
    %127 = arith.divf %125, %126 : vector<8x64xf32>
    %128 = vector.extract_strided_slice %127 {offsets = [0, 0], sizes = [8, 32], strides = [1, 1]} : vector<8x64xf32> to vector<8x32xf32>
    %129 = arith.mulf %85, %128 : vector<8x32xf32>
    %130 = vector.extract_strided_slice %127 {offsets = [0, 32], sizes = [8, 32], strides = [1, 1]} : vector<8x64xf32> to vector<8x32xf32>
    %131 = vector.extract_strided_slice %117 {offsets = [0, 64], sizes = [8, 32], strides = [1, 1]} : vector<8x128xf32> to vector<8x32xf32>
    %132 = math.tanh %131 : vector<8x32xf32>
    %133 = arith.mulf %130, %132 : vector<8x32xf32>
    %134 = arith.addf %129, %133 : vector<8x32xf32>
    %135 = vector.extract_strided_slice %117 {offsets = [0, 96], sizes = [8, 32], strides = [1, 1]} : vector<8x128xf32> to vector<8x32xf32>
    %136 = math.tanh %134 : vector<8x32xf32>
    %137 = arith.mulf %135, %136 : vector<8x32xf32>
    %138 = vector.extract_strided_slice %121 {offsets = [0, 0], sizes = [8, 64], strides = [1, 1]} : vector<8x128xf32> to vector<8x64xf32>
    %139 = arith.negf %138 : vector<8x64xf32>
    %140 = math.exp %139 : vector<8x64xf32>
    %cst_42 = arith.constant 1.000000e+00 : f32
    %141 = vector.broadcast %cst_42 : f32 to vector<8x64xf32>
    %142 = arith.addf %141, %140 : vector<8x64xf32>
    %143 = arith.divf %141, %142 : vector<8x64xf32>
    %144 = vector.extract_strided_slice %143 {offsets = [0, 0], sizes = [8, 32], strides = [1, 1]} : vector<8x64xf32> to vector<8x32xf32>
    %145 = arith.mulf %101, %144 : vector<8x32xf32>
    %146 = vector.extract_strided_slice %143 {offsets = [0, 32], sizes = [8, 32], strides = [1, 1]} : vector<8x64xf32> to vector<8x32xf32>
    %147 = vector.extract_strided_slice %121 {offsets = [0, 64], sizes = [8, 32], strides = [1, 1]} : vector<8x128xf32> to vector<8x32xf32>
    %148 = math.tanh %147 : vector<8x32xf32>
    %149 = arith.mulf %146, %148 : vector<8x32xf32>
    %150 = arith.addf %145, %149 : vector<8x32xf32>
    %151 = vector.extract_strided_slice %121 {offsets = [0, 96], sizes = [8, 32], strides = [1, 1]} : vector<8x128xf32> to vector<8x32xf32>
    %152 = math.tanh %150 : vector<8x32xf32>
    %153 = arith.mulf %151, %152 : vector<8x32xf32>
    %154 = arith.index_cast %110 : i32 to index
    %c0_43 = arith.constant 0 : index
    %155 = vector.load %arg7[%154, %c0_43] : memref<64x32xf32, #tpu.memory_space<vmem>>, vector<8x32xf32>
    tpu.vector_store %arg7[%154, %c0_43], %137 {strides = array<i32>} : memref<64x32xf32, #tpu.memory_space<vmem>>, vector<8x32xf32>,
    %156 = arith.index_cast %113 : i32 to index
    %c0_44 = arith.constant 0 : index
    %157 = vector.load %arg9[%156, %c0_44] : memref<64x32xf32, #tpu.memory_space<vmem>>, vector<8x32xf32>
    tpu.vector_store %arg9[%156, %c0_44], %153 {strides = array<i32>} : memref<64x32xf32, #tpu.memory_space<vmem>>, vector<8x32xf32>,
    %c3_i32 = arith.constant 3 : i32
    %c8_i32_45 = arith.constant 8 : i32
    %158 = arith.muli %c3_i32, %c8_i32_45 : i32
    %159 = tpu.assume_multiple %158, 8 : i32
    %c7_i32_46 = arith.constant 7 : i32
    %160 = arith.subi %c7_i32_46, %c3_i32 : i32
    %c8_i32_47 = arith.constant 8 : i32
    %161 = arith.muli %160, %c8_i32_47 : i32
    %162 = tpu.assume_multiple %161, 8 : i32
    %163 = arith.index_cast %159 : i32 to index
    %c0_48 = arith.constant 0 : index
    %164 = vector.load %arg8[%163, %c0_48] : memref<64x256xf32, #tpu.memory_space<vmem>>, vector<8x128xf32>
    %cst_49 = arith.constant dense<0.000000e+00> : vector<8x128xf32>
    %165 = tpu.matmul %137, %7, %cst_49 {dimension_numbers = #tpu.dot_dimension_numbers<[1], [0], [0], [1], [0, 0, 1, 1], [], []>} : vector<8x32xf32>, vector<32x128xf32>, vector<8x128xf32> -> vector<8x128xf32>
    %166 = arith.addf %164, %165 : vector<8x128xf32>
    %167 = arith.index_cast %162 : i32 to index
    %c128_50 = arith.constant 128 : index
    %168 = vector.load %arg8[%167, %c128_50] : memref<64x256xf32, #tpu.memory_space<vmem>>, vector<8x128xf32>
    %cst_51 = arith.constant dense<0.000000e+00> : vector<8x128xf32>
    %169 = tpu.matmul %153, %8, %cst_51 {dimension_numbers = #tpu.dot_dimension_numbers<[1], [0], [0], [1], [0, 0, 1, 1], [], []>} : vector<8x32xf32>, vector<32x128xf32>, vector<8x128xf32> -> vector<8x128xf32>
    %170 = arith.addf %168, %169 : vector<8x128xf32>
    %171 = vector.extract_strided_slice %166 {offsets = [0, 0], sizes = [8, 64], strides = [1, 1]} : vector<8x128xf32> to vector<8x64xf32>
    %172 = arith.negf %171 : vector<8x64xf32>
    %173 = math.exp %172 : vector<8x64xf32>
    %cst_52 = arith.constant 1.000000e+00 : f32
    %174 = vector.broadcast %cst_52 : f32 to vector<8x64xf32>
    %175 = arith.addf %174, %173 : vector<8x64xf32>
    %176 = arith.divf %174, %175 : vector<8x64xf32>
    %177 = vector.extract_strided_slice %176 {offsets = [0, 0], sizes = [8, 32], strides = [1, 1]} : vector<8x64xf32> to vector<8x32xf32>
    %178 = arith.mulf %134, %177 : vector<8x32xf32>
    %179 = vector.extract_strided_slice %176 {offsets = [0, 32], sizes = [8, 32], strides = [1, 1]} : vector<8x64xf32> to vector<8x32xf32>
    %180 = vector.extract_strided_slice %166 {offsets = [0, 64], sizes = [8, 32], strides = [1, 1]} : vector<8x128xf32> to vector<8x32xf32>
    %181 = math.tanh %180 : vector<8x32xf32>
    %182 = arith.mulf %179, %181 : vector<8x32xf32>
    %183 = arith.addf %178, %182 : vector<8x32xf32>
    %184 = vector.extract_strided_slice %166 {offsets = [0, 96], sizes = [8, 32], strides = [1, 1]} : vector<8x128xf32> to vector<8x32xf32>
    %185 = math.tanh %183 : vector<8x32xf32>
    %186 = arith.mulf %184, %185 : vector<8x32xf32>
    %187 = vector.extract_strided_slice %170 {offsets = [0, 0], sizes = [8, 64], strides = [1, 1]} : vector<8x128xf32> to vector<8x64xf32>
    %188 = arith.negf %187 : vector<8x64xf32>
    %189 = math.exp %188 : vector<8x64xf32>
    %cst_53 = arith.constant 1.000000e+00 : f32
    %190 = vector.broadcast %cst_53 : f32 to vector<8x64xf32>
    %191 = arith.addf %190, %189 : vector<8x64xf32>
    %192 = arith.divf %190, %191 : vector<8x64xf32>
    %193 = vector.extract_strided_slice %192 {offsets = [0, 0], sizes = [8, 32], strides = [1, 1]} : vector<8x64xf32> to vector<8x32xf32>
    %194 = arith.mulf %150, %193 : vector<8x32xf32>
    %195 = vector.extract_strided_slice %192 {offsets = [0, 32], sizes = [8, 32], strides = [1, 1]} : vector<8x64xf32> to vector<8x32xf32>
    %196 = vector.extract_strided_slice %170 {offsets = [0, 64], sizes = [8, 32], strides = [1, 1]} : vector<8x128xf32> to vector<8x32xf32>
    %197 = math.tanh %196 : vector<8x32xf32>
    %198 = arith.mulf %195, %197 : vector<8x32xf32>
    %199 = arith.addf %194, %198 : vector<8x32xf32>
    %200 = vector.extract_strided_slice %170 {offsets = [0, 96], sizes = [8, 32], strides = [1, 1]} : vector<8x128xf32> to vector<8x32xf32>
    %201 = math.tanh %199 : vector<8x32xf32>
    %202 = arith.mulf %200, %201 : vector<8x32xf32>
    %203 = arith.index_cast %159 : i32 to index
    %c0_54 = arith.constant 0 : index
    %204 = vector.load %arg7[%203, %c0_54] : memref<64x32xf32, #tpu.memory_space<vmem>>, vector<8x32xf32>
    tpu.vector_store %arg7[%203, %c0_54], %186 {strides = array<i32>} : memref<64x32xf32, #tpu.memory_space<vmem>>, vector<8x32xf32>,
    %205 = arith.index_cast %162 : i32 to index
    %c0_55 = arith.constant 0 : index
    %206 = vector.load %arg9[%205, %c0_55] : memref<64x32xf32, #tpu.memory_space<vmem>>, vector<8x32xf32>
    tpu.vector_store %arg9[%205, %c0_55], %202 {strides = array<i32>} : memref<64x32xf32, #tpu.memory_space<vmem>>, vector<8x32xf32>,
    %c4_i32 = arith.constant 4 : i32
    %c8_i32_56 = arith.constant 8 : i32
    %207 = arith.muli %c4_i32, %c8_i32_56 : i32
    %208 = tpu.assume_multiple %207, 8 : i32
    %c7_i32_57 = arith.constant 7 : i32
    %209 = arith.subi %c7_i32_57, %c4_i32 : i32
    %c8_i32_58 = arith.constant 8 : i32
    %210 = arith.muli %209, %c8_i32_58 : i32
    %211 = tpu.assume_multiple %210, 8 : i32
    %212 = arith.index_cast %208 : i32 to index
    %c0_59 = arith.constant 0 : index
    %213 = vector.load %arg8[%212, %c0_59] : memref<64x256xf32, #tpu.memory_space<vmem>>, vector<8x128xf32>
    %cst_60 = arith.constant dense<0.000000e+00> : vector<8x128xf32>
    %214 = tpu.matmul %186, %7, %cst_60 {dimension_numbers = #tpu.dot_dimension_numbers<[1], [0], [0], [1], [0, 0, 1, 1], [], []>} : vector<8x32xf32>, vector<32x128xf32>, vector<8x128xf32> -> vector<8x128xf32>
    %215 = arith.addf %213, %214 : vector<8x128xf32>
    %216 = arith.index_cast %211 : i32 to index
    %c128_61 = arith.constant 128 : index
    %217 = vector.load %arg8[%216, %c128_61] : memref<64x256xf32, #tpu.memory_space<vmem>>, vector<8x128xf32>
    %cst_62 = arith.constant dense<0.000000e+00> : vector<8x128xf32>
    %218 = tpu.matmul %202, %8, %cst_62 {dimension_numbers = #tpu.dot_dimension_numbers<[1], [0], [0], [1], [0, 0, 1, 1], [], []>} : vector<8x32xf32>, vector<32x128xf32>, vector<8x128xf32> -> vector<8x128xf32>
    %219 = arith.addf %217, %218 : vector<8x128xf32>
    %220 = vector.extract_strided_slice %215 {offsets = [0, 0], sizes = [8, 64], strides = [1, 1]} : vector<8x128xf32> to vector<8x64xf32>
    %221 = arith.negf %220 : vector<8x64xf32>
    %222 = math.exp %221 : vector<8x64xf32>
    %cst_63 = arith.constant 1.000000e+00 : f32
    %223 = vector.broadcast %cst_63 : f32 to vector<8x64xf32>
    %224 = arith.addf %223, %222 : vector<8x64xf32>
    %225 = arith.divf %223, %224 : vector<8x64xf32>
    %226 = vector.extract_strided_slice %225 {offsets = [0, 0], sizes = [8, 32], strides = [1, 1]} : vector<8x64xf32> to vector<8x32xf32>
    %227 = arith.mulf %183, %226 : vector<8x32xf32>
    %228 = vector.extract_strided_slice %225 {offsets = [0, 32], sizes = [8, 32], strides = [1, 1]} : vector<8x64xf32> to vector<8x32xf32>
    %229 = vector.extract_strided_slice %215 {offsets = [0, 64], sizes = [8, 32], strides = [1, 1]} : vector<8x128xf32> to vector<8x32xf32>
    %230 = math.tanh %229 : vector<8x32xf32>
    %231 = arith.mulf %228, %230 : vector<8x32xf32>
    %232 = arith.addf %227, %231 : vector<8x32xf32>
    %233 = vector.extract_strided_slice %215 {offsets = [0, 96], sizes = [8, 32], strides = [1, 1]} : vector<8x128xf32> to vector<8x32xf32>
    %234 = math.tanh %232 : vector<8x32xf32>
    %235 = arith.mulf %233, %234 : vector<8x32xf32>
    %236 = vector.extract_strided_slice %219 {offsets = [0, 0], sizes = [8, 64], strides = [1, 1]} : vector<8x128xf32> to vector<8x64xf32>
    %237 = arith.negf %236 : vector<8x64xf32>
    %238 = math.exp %237 : vector<8x64xf32>
    %cst_64 = arith.constant 1.000000e+00 : f32
    %239 = vector.broadcast %cst_64 : f32 to vector<8x64xf32>
    %240 = arith.addf %239, %238 : vector<8x64xf32>
    %241 = arith.divf %239, %240 : vector<8x64xf32>
    %242 = vector.extract_strided_slice %241 {offsets = [0, 0], sizes = [8, 32], strides = [1, 1]} : vector<8x64xf32> to vector<8x32xf32>
    %243 = arith.mulf %199, %242 : vector<8x32xf32>
    %244 = vector.extract_strided_slice %241 {offsets = [0, 32], sizes = [8, 32], strides = [1, 1]} : vector<8x64xf32> to vector<8x32xf32>
    %245 = vector.extract_strided_slice %219 {offsets = [0, 64], sizes = [8, 32], strides = [1, 1]} : vector<8x128xf32> to vector<8x32xf32>
    %246 = math.tanh %245 : vector<8x32xf32>
    %247 = arith.mulf %244, %246 : vector<8x32xf32>
    %248 = arith.addf %243, %247 : vector<8x32xf32>
    %249 = vector.extract_strided_slice %219 {offsets = [0, 96], sizes = [8, 32], strides = [1, 1]} : vector<8x128xf32> to vector<8x32xf32>
    %250 = math.tanh %248 : vector<8x32xf32>
    %251 = arith.mulf %249, %250 : vector<8x32xf32>
    %252 = arith.index_cast %208 : i32 to index
    %c0_65 = arith.constant 0 : index
    %253 = vector.load %arg7[%252, %c0_65] : memref<64x32xf32, #tpu.memory_space<vmem>>, vector<8x32xf32>
    tpu.vector_store %arg7[%252, %c0_65], %235 {strides = array<i32>} : memref<64x32xf32, #tpu.memory_space<vmem>>, vector<8x32xf32>,
    %254 = arith.index_cast %211 : i32 to index
    %c0_66 = arith.constant 0 : index
    %255 = vector.load %arg9[%254, %c0_66] : memref<64x32xf32, #tpu.memory_space<vmem>>, vector<8x32xf32>
    tpu.vector_store %arg9[%254, %c0_66], %251 {strides = array<i32>} : memref<64x32xf32, #tpu.memory_space<vmem>>, vector<8x32xf32>,
    %c5_i32 = arith.constant 5 : i32
    %c8_i32_67 = arith.constant 8 : i32
    %256 = arith.muli %c5_i32, %c8_i32_67 : i32
    %257 = tpu.assume_multiple %256, 8 : i32
    %c7_i32_68 = arith.constant 7 : i32
    %258 = arith.subi %c7_i32_68, %c5_i32 : i32
    %c8_i32_69 = arith.constant 8 : i32
    %259 = arith.muli %258, %c8_i32_69 : i32
    %260 = tpu.assume_multiple %259, 8 : i32
    %261 = arith.index_cast %257 : i32 to index
    %c0_70 = arith.constant 0 : index
    %262 = vector.load %arg8[%261, %c0_70] : memref<64x256xf32, #tpu.memory_space<vmem>>, vector<8x128xf32>
    %cst_71 = arith.constant dense<0.000000e+00> : vector<8x128xf32>
    %263 = tpu.matmul %235, %7, %cst_71 {dimension_numbers = #tpu.dot_dimension_numbers<[1], [0], [0], [1], [0, 0, 1, 1], [], []>} : vector<8x32xf32>, vector<32x128xf32>, vector<8x128xf32> -> vector<8x128xf32>
    %264 = arith.addf %262, %263 : vector<8x128xf32>
    %265 = arith.index_cast %260 : i32 to index
    %c128_72 = arith.constant 128 : index
    %266 = vector.load %arg8[%265, %c128_72] : memref<64x256xf32, #tpu.memory_space<vmem>>, vector<8x128xf32>
    %cst_73 = arith.constant dense<0.000000e+00> : vector<8x128xf32>
    %267 = tpu.matmul %251, %8, %cst_73 {dimension_numbers = #tpu.dot_dimension_numbers<[1], [0], [0], [1], [0, 0, 1, 1], [], []>} : vector<8x32xf32>, vector<32x128xf32>, vector<8x128xf32> -> vector<8x128xf32>
    %268 = arith.addf %266, %267 : vector<8x128xf32>
    %269 = vector.extract_strided_slice %264 {offsets = [0, 0], sizes = [8, 64], strides = [1, 1]} : vector<8x128xf32> to vector<8x64xf32>
    %270 = arith.negf %269 : vector<8x64xf32>
    %271 = math.exp %270 : vector<8x64xf32>
    %cst_74 = arith.constant 1.000000e+00 : f32
    %272 = vector.broadcast %cst_74 : f32 to vector<8x64xf32>
    %273 = arith.addf %272, %271 : vector<8x64xf32>
    %274 = arith.divf %272, %273 : vector<8x64xf32>
    %275 = vector.extract_strided_slice %274 {offsets = [0, 0], sizes = [8, 32], strides = [1, 1]} : vector<8x64xf32> to vector<8x32xf32>
    %276 = arith.mulf %232, %275 : vector<8x32xf32>
    %277 = vector.extract_strided_slice %274 {offsets = [0, 32], sizes = [8, 32], strides = [1, 1]} : vector<8x64xf32> to vector<8x32xf32>
    %278 = vector.extract_strided_slice %264 {offsets = [0, 64], sizes = [8, 32], strides = [1, 1]} : vector<8x128xf32> to vector<8x32xf32>
    %279 = math.tanh %278 : vector<8x32xf32>
    %280 = arith.mulf %277, %279 : vector<8x32xf32>
    %281 = arith.addf %276, %280 : vector<8x32xf32>
    %282 = vector.extract_strided_slice %264 {offsets = [0, 96], sizes = [8, 32], strides = [1, 1]} : vector<8x128xf32> to vector<8x32xf32>
    %283 = math.tanh %281 : vector<8x32xf32>
    %284 = arith.mulf %282, %283 : vector<8x32xf32>
    %285 = vector.extract_strided_slice %268 {offsets = [0, 0], sizes = [8, 64], strides = [1, 1]} : vector<8x128xf32> to vector<8x64xf32>
    %286 = arith.negf %285 : vector<8x64xf32>
    %287 = math.exp %286 : vector<8x64xf32>
    %cst_75 = arith.constant 1.000000e+00 : f32
    %288 = vector.broadcast %cst_75 : f32 to vector<8x64xf32>
    %289 = arith.addf %288, %287 : vector<8x64xf32>
    %290 = arith.divf %288, %289 : vector<8x64xf32>
    %291 = vector.extract_strided_slice %290 {offsets = [0, 0], sizes = [8, 32], strides = [1, 1]} : vector<8x64xf32> to vector<8x32xf32>
    %292 = arith.mulf %248, %291 : vector<8x32xf32>
    %293 = vector.extract_strided_slice %290 {offsets = [0, 32], sizes = [8, 32], strides = [1, 1]} : vector<8x64xf32> to vector<8x32xf32>
    %294 = vector.extract_strided_slice %268 {offsets = [0, 64], sizes = [8, 32], strides = [1, 1]} : vector<8x128xf32> to vector<8x32xf32>
    %295 = math.tanh %294 : vector<8x32xf32>
    %296 = arith.mulf %293, %295 : vector<8x32xf32>
    %297 = arith.addf %292, %296 : vector<8x32xf32>
    %298 = vector.extract_strided_slice %268 {offsets = [0, 96], sizes = [8, 32], strides = [1, 1]} : vector<8x128xf32> to vector<8x32xf32>
    %299 = math.tanh %297 : vector<8x32xf32>
    %300 = arith.mulf %298, %299 : vector<8x32xf32>
    %301 = arith.index_cast %257 : i32 to index
    %c0_76 = arith.constant 0 : index
    %302 = vector.load %arg7[%301, %c0_76] : memref<64x32xf32, #tpu.memory_space<vmem>>, vector<8x32xf32>
    tpu.vector_store %arg7[%301, %c0_76], %284 {strides = array<i32>} : memref<64x32xf32, #tpu.memory_space<vmem>>, vector<8x32xf32>,
    %303 = arith.index_cast %260 : i32 to index
    %c0_77 = arith.constant 0 : index
    %304 = vector.load %arg9[%303, %c0_77] : memref<64x32xf32, #tpu.memory_space<vmem>>, vector<8x32xf32>
    tpu.vector_store %arg9[%303, %c0_77], %300 {strides = array<i32>} : memref<64x32xf32, #tpu.memory_space<vmem>>, vector<8x32xf32>,
    %c6_i32 = arith.constant 6 : i32
    %c8_i32_78 = arith.constant 8 : i32
    %305 = arith.muli %c6_i32, %c8_i32_78 : i32
    %306 = tpu.assume_multiple %305, 8 : i32
    %c7_i32_79 = arith.constant 7 : i32
    %307 = arith.subi %c7_i32_79, %c6_i32 : i32
    %c8_i32_80 = arith.constant 8 : i32
    %308 = arith.muli %307, %c8_i32_80 : i32
    %309 = tpu.assume_multiple %308, 8 : i32
    %310 = arith.index_cast %306 : i32 to index
    %c0_81 = arith.constant 0 : index
    %311 = vector.load %arg8[%310, %c0_81] : memref<64x256xf32, #tpu.memory_space<vmem>>, vector<8x128xf32>
    %cst_82 = arith.constant dense<0.000000e+00> : vector<8x128xf32>
    %312 = tpu.matmul %284, %7, %cst_82 {dimension_numbers = #tpu.dot_dimension_numbers<[1], [0], [0], [1], [0, 0, 1, 1], [], []>} : vector<8x32xf32>, vector<32x128xf32>, vector<8x128xf32> -> vector<8x128xf32>
    %313 = arith.addf %311, %312 : vector<8x128xf32>
    %314 = arith.index_cast %309 : i32 to index
    %c128_83 = arith.constant 128 : index
    %315 = vector.load %arg8[%314, %c128_83] : memref<64x256xf32, #tpu.memory_space<vmem>>, vector<8x128xf32>
    %cst_84 = arith.constant dense<0.000000e+00> : vector<8x128xf32>
    %316 = tpu.matmul %300, %8, %cst_84 {dimension_numbers = #tpu.dot_dimension_numbers<[1], [0], [0], [1], [0, 0, 1, 1], [], []>} : vector<8x32xf32>, vector<32x128xf32>, vector<8x128xf32> -> vector<8x128xf32>
    %317 = arith.addf %315, %316 : vector<8x128xf32>
    %318 = vector.extract_strided_slice %313 {offsets = [0, 0], sizes = [8, 64], strides = [1, 1]} : vector<8x128xf32> to vector<8x64xf32>
    %319 = arith.negf %318 : vector<8x64xf32>
    %320 = math.exp %319 : vector<8x64xf32>
    %cst_85 = arith.constant 1.000000e+00 : f32
    %321 = vector.broadcast %cst_85 : f32 to vector<8x64xf32>
    %322 = arith.addf %321, %320 : vector<8x64xf32>
    %323 = arith.divf %321, %322 : vector<8x64xf32>
    %324 = vector.extract_strided_slice %323 {offsets = [0, 0], sizes = [8, 32], strides = [1, 1]} : vector<8x64xf32> to vector<8x32xf32>
    %325 = arith.mulf %281, %324 : vector<8x32xf32>
    %326 = vector.extract_strided_slice %323 {offsets = [0, 32], sizes = [8, 32], strides = [1, 1]} : vector<8x64xf32> to vector<8x32xf32>
    %327 = vector.extract_strided_slice %313 {offsets = [0, 64], sizes = [8, 32], strides = [1, 1]} : vector<8x128xf32> to vector<8x32xf32>
    %328 = math.tanh %327 : vector<8x32xf32>
    %329 = arith.mulf %326, %328 : vector<8x32xf32>
    %330 = arith.addf %325, %329 : vector<8x32xf32>
    %331 = vector.extract_strided_slice %313 {offsets = [0, 96], sizes = [8, 32], strides = [1, 1]} : vector<8x128xf32> to vector<8x32xf32>
    %332 = math.tanh %330 : vector<8x32xf32>
    %333 = arith.mulf %331, %332 : vector<8x32xf32>
    %334 = vector.extract_strided_slice %317 {offsets = [0, 0], sizes = [8, 64], strides = [1, 1]} : vector<8x128xf32> to vector<8x64xf32>
    %335 = arith.negf %334 : vector<8x64xf32>
    %336 = math.exp %335 : vector<8x64xf32>
    %cst_86 = arith.constant 1.000000e+00 : f32
    %337 = vector.broadcast %cst_86 : f32 to vector<8x64xf32>
    %338 = arith.addf %337, %336 : vector<8x64xf32>
    %339 = arith.divf %337, %338 : vector<8x64xf32>
    %340 = vector.extract_strided_slice %339 {offsets = [0, 0], sizes = [8, 32], strides = [1, 1]} : vector<8x64xf32> to vector<8x32xf32>
    %341 = arith.mulf %297, %340 : vector<8x32xf32>
    %342 = vector.extract_strided_slice %339 {offsets = [0, 32], sizes = [8, 32], strides = [1, 1]} : vector<8x64xf32> to vector<8x32xf32>
    %343 = vector.extract_strided_slice %317 {offsets = [0, 64], sizes = [8, 32], strides = [1, 1]} : vector<8x128xf32> to vector<8x32xf32>
    %344 = math.tanh %343 : vector<8x32xf32>
    %345 = arith.mulf %342, %344 : vector<8x32xf32>
    %346 = arith.addf %341, %345 : vector<8x32xf32>
    %347 = vector.extract_strided_slice %317 {offsets = [0, 96], sizes = [8, 32], strides = [1, 1]} : vector<8x128xf32> to vector<8x32xf32>
    %348 = math.tanh %346 : vector<8x32xf32>
    %349 = arith.mulf %347, %348 : vector<8x32xf32>
    %350 = arith.index_cast %306 : i32 to index
    %c0_87 = arith.constant 0 : index
    %351 = vector.load %arg7[%350, %c0_87] : memref<64x32xf32, #tpu.memory_space<vmem>>, vector<8x32xf32>
    tpu.vector_store %arg7[%350, %c0_87], %333 {strides = array<i32>} : memref<64x32xf32, #tpu.memory_space<vmem>>, vector<8x32xf32>,
    %352 = arith.index_cast %309 : i32 to index
    %c0_88 = arith.constant 0 : index
    %353 = vector.load %arg9[%352, %c0_88] : memref<64x32xf32, #tpu.memory_space<vmem>>, vector<8x32xf32>
    tpu.vector_store %arg9[%352, %c0_88], %349 {strides = array<i32>} : memref<64x32xf32, #tpu.memory_space<vmem>>, vector<8x32xf32>,
    %c7_i32_89 = arith.constant 7 : i32
    %c8_i32_90 = arith.constant 8 : i32
    %354 = arith.muli %c7_i32_89, %c8_i32_90 : i32
    %355 = tpu.assume_multiple %354, 8 : i32
    %c7_i32_91 = arith.constant 7 : i32
    %356 = arith.subi %c7_i32_91, %c7_i32_89 : i32
    %c8_i32_92 = arith.constant 8 : i32
    %357 = arith.muli %356, %c8_i32_92 : i32
    %358 = tpu.assume_multiple %357, 8 : i32
    %359 = arith.index_cast %355 : i32 to index
    %c0_93 = arith.constant 0 : index
    %360 = vector.load %arg8[%359, %c0_93] : memref<64x256xf32, #tpu.memory_space<vmem>>, vector<8x128xf32>
    %cst_94 = arith.constant dense<0.000000e+00> : vector<8x128xf32>
    %361 = tpu.matmul %333, %7, %cst_94 {dimension_numbers = #tpu.dot_dimension_numbers<[1], [0], [0], [1], [0, 0, 1, 1], [], []>} : vector<8x32xf32>, vector<32x128xf32>, vector<8x128xf32> -> vector<8x128xf32>
    %362 = arith.addf %360, %361 : vector<8x128xf32>
    %363 = arith.index_cast %358 : i32 to index
    %c128_95 = arith.constant 128 : index
    %364 = vector.load %arg8[%363, %c128_95] : memref<64x256xf32, #tpu.memory_space<vmem>>, vector<8x128xf32>
    %cst_96 = arith.constant dense<0.000000e+00> : vector<8x128xf32>
    %365 = tpu.matmul %349, %8, %cst_96 {dimension_numbers = #tpu.dot_dimension_numbers<[1], [0], [0], [1], [0, 0, 1, 1], [], []>} : vector<8x32xf32>, vector<32x128xf32>, vector<8x128xf32> -> vector<8x128xf32>
    %366 = arith.addf %364, %365 : vector<8x128xf32>
    %367 = vector.extract_strided_slice %362 {offsets = [0, 0], sizes = [8, 64], strides = [1, 1]} : vector<8x128xf32> to vector<8x64xf32>
    %368 = arith.negf %367 : vector<8x64xf32>
    %369 = math.exp %368 : vector<8x64xf32>
    %cst_97 = arith.constant 1.000000e+00 : f32
    %370 = vector.broadcast %cst_97 : f32 to vector<8x64xf32>
    %371 = arith.addf %370, %369 : vector<8x64xf32>
    %372 = arith.divf %370, %371 : vector<8x64xf32>
    %373 = vector.extract_strided_slice %372 {offsets = [0, 0], sizes = [8, 32], strides = [1, 1]} : vector<8x64xf32> to vector<8x32xf32>
    %374 = arith.mulf %330, %373 : vector<8x32xf32>
    %375 = vector.extract_strided_slice %372 {offsets = [0, 32], sizes = [8, 32], strides = [1, 1]} : vector<8x64xf32> to vector<8x32xf32>
    %376 = vector.extract_strided_slice %362 {offsets = [0, 64], sizes = [8, 32], strides = [1, 1]} : vector<8x128xf32> to vector<8x32xf32>
    %377 = math.tanh %376 : vector<8x32xf32>
    %378 = arith.mulf %375, %377 : vector<8x32xf32>
    %379 = arith.addf %374, %378 : vector<8x32xf32>
    %380 = vector.extract_strided_slice %362 {offsets = [0, 96], sizes = [8, 32], strides = [1, 1]} : vector<8x128xf32> to vector<8x32xf32>
    %381 = math.tanh %379 : vector<8x32xf32>
    %382 = arith.mulf %380, %381 : vector<8x32xf32>
    %383 = vector.extract_strided_slice %366 {offsets = [0, 0], sizes = [8, 64], strides = [1, 1]} : vector<8x128xf32> to vector<8x64xf32>
    %384 = arith.negf %383 : vector<8x64xf32>
    %385 = math.exp %384 : vector<8x64xf32>
    %cst_98 = arith.constant 1.000000e+00 : f32
    %386 = vector.broadcast %cst_98 : f32 to vector<8x64xf32>
    %387 = arith.addf %386, %385 : vector<8x64xf32>
    %388 = arith.divf %386, %387 : vector<8x64xf32>
    %389 = vector.extract_strided_slice %388 {offsets = [0, 0], sizes = [8, 32], strides = [1, 1]} : vector<8x64xf32> to vector<8x32xf32>
    %390 = arith.mulf %346, %389 : vector<8x32xf32>
    %391 = vector.extract_strided_slice %388 {offsets = [0, 32], sizes = [8, 32], strides = [1, 1]} : vector<8x64xf32> to vector<8x32xf32>
    %392 = vector.extract_strided_slice %366 {offsets = [0, 64], sizes = [8, 32], strides = [1, 1]} : vector<8x128xf32> to vector<8x32xf32>
    %393 = math.tanh %392 : vector<8x32xf32>
    %394 = arith.mulf %391, %393 : vector<8x32xf32>
    %395 = arith.addf %390, %394 : vector<8x32xf32>
    %396 = vector.extract_strided_slice %366 {offsets = [0, 96], sizes = [8, 32], strides = [1, 1]} : vector<8x128xf32> to vector<8x32xf32>
    %397 = math.tanh %395 : vector<8x32xf32>
    %398 = arith.mulf %396, %397 : vector<8x32xf32>
    %399 = arith.index_cast %355 : i32 to index
    %c0_99 = arith.constant 0 : index
    %400 = vector.load %arg7[%399, %c0_99] : memref<64x32xf32, #tpu.memory_space<vmem>>, vector<8x32xf32>
    tpu.vector_store %arg7[%399, %c0_99], %382 {strides = array<i32>} : memref<64x32xf32, #tpu.memory_space<vmem>>, vector<8x32xf32>,
    %401 = arith.index_cast %358 : i32 to index
    %c0_100 = arith.constant 0 : index
    %402 = vector.load %arg9[%401, %c0_100] : memref<64x32xf32, #tpu.memory_space<vmem>>, vector<8x32xf32>
    tpu.vector_store %arg9[%401, %c0_100], %398 {strides = array<i32>} : memref<64x32xf32, #tpu.memory_space<vmem>>, vector<8x32xf32>,
    %c8_i32_101 = arith.constant 8 : i32
    %c0_102 = arith.constant 0 : index
    %c0_103 = arith.constant 0 : index
    %403 = vector.load %arg7[%c0_102, %c0_103] : memref<64x32xf32, #tpu.memory_space<vmem>>, vector<64x32xf32>
    %c0_104 = arith.constant 0 : index
    %c0_105 = arith.constant 0 : index
    %404 = vector.load %arg9[%c0_104, %c0_105] : memref<64x32xf32, #tpu.memory_space<vmem>>, vector<64x32xf32>
    %405 = arith.addf %403, %404 : vector<64x32xf32>
    %c0_106 = arith.constant 0 : index
    %c0_107 = arith.constant 0 : index
    %406 = vector.load %arg7[%c0_106, %c0_107] : memref<64x32xf32, #tpu.memory_space<vmem>>, vector<64x32xf32>
    tpu.vector_store %arg7[%c0_106, %c0_107], %405 {strides = array<i32>} : memref<64x32xf32, #tpu.memory_space<vmem>>, vector<64x32xf32>,
    return
  }
}

</mosaic_0001>

<llo_original>
// kernel: tpu_custom_call.1
$region0: #{tpu_custom_call.1}
  #allocation0 [shape = 'u32[]', space=smem, size = 0x4, offset = 0x4, fixed_abs, tag = 'smem constant byte address 0x4 - core index']
  #allocation1 [shape = 'u32[144,128]{1,0:T(1,128)}', space=vmem, size = 0x12000, scoped, tag = 'internal scratch']
  #allocation2 [shape = 'f32[64,256]{1,0:T(8,128)}', space=vmem, size = 0x10000, scoped, tag = 'scratch operand']
  #allocation3 [shape = 'f32[64,32]{1,0:T(8,128)}', space=vmem, size = 0x8000, scoped, tag = 'scratch operand']
  %s0 = inlined_call_operand.vmem [shape: f32[64,16], index: 0, kind: input, shape index: {}]
  %s1 = inlined_call_operand.hbm [shape: f32[8,32], index: 1, kind: input, shape index: {}]
  %s2 = inlined_call_operand.hbm [shape: f32[8,32], index: 2, kind: input, shape index: {}]
  %s3 = inlined_call_operand.vmem [shape: f32[16,256], index: 3, kind: input, shape index: {}]
  %s4 = inlined_call_operand.vmem [shape: f32[1,256], index: 4, kind: input, shape index: {}]
  %s5 = inlined_call_operand.vmem [shape: f32[32,128], index: 5, kind: input, shape index: {}]
  %s6 = inlined_call_operand.vmem [shape: f32[32,128], index: 6, kind: input, shape index: {}]
  %s7 = inlined_call_operand.vmem [shape: f32[64,32], index: 7, kind: output, shape index: {}]
  %s8 = sld [smem:[#allocation0]]
  $region46: #{tpu_custom_call.1} parent=0
    _
  %s10 = ssub.s32 1, %s8
  %s11 = scalar_select 0, %s10, %s8
  $region1: #{tpu_custom_call.1} parent=0
    #allocation4 [shape = 'u8[4096]{0}', space=vmem, size = 0x1000, scoped, tag = 'input window, operand 1, single buffered']
    #allocation5 [shape = 's32[1]{0}', space=sflag, size = 0x4, scoped, tag = 'scoped memory for tpu_custom_call.1']
    #allocation6 [shape = 'u8[4096]{0}', space=vmem, size = 0x1000, scoped, tag = 'input window, operand 2, single buffered']
    #allocation7 [shape = 's32[1]{0}', space=sflag, size = 0x4, scoped, tag = 'scoped memory for tpu_custom_call.1']
    %12 = vsyncpa [#allocation5], 0
    %13 = vsyncpa [#allocation7], 0
    // Predicated region
    $region2: #{tpu_custom_call.1} parent=1 // pred_check
      _
    $region3: #{tpu_custom_call.1} parent=1 // pred_check_branch
      %15 = sbr.rel (0) target = $region5
    $region4: #{tpu_custom_call.1} parent=1 // pred_region
      _
    $region5: #{tpu_custom_call.1} parent=1 // pred_fallthru
      _
    // Predicated region
    $region6: #{tpu_custom_call.1} parent=1 // pred_check
      _
    $region7: #{tpu_custom_call.1} parent=1 // pred_check_branch
      %17 = sbr.rel (0) target = $region9
    $region8: #{tpu_custom_call.1} parent=1 // pred_region
      %s19 = ssub.s32 128, 128
      %20 = vsyncadd [#allocation5], %s19
      %s22 = sshll.u32 [#allocation4], 4
      %s23 = int_to_ptr.vmem [resolvable:$true] %s22
      %25 = dma.hbm_to_vmem [thread:$0]  %s1, 128, %s23, [#allocation5]
    $region9: #{tpu_custom_call.1} parent=1 // pred_fallthru
      _
    // Predicated region
    $region10: #{tpu_custom_call.1} parent=1 // pred_check
      _
    $region11: #{tpu_custom_call.1} parent=1 // pred_check_branch
      %27 = sbr.rel (0) target = $region13
    $region12: #{tpu_custom_call.1} parent=1 // pred_region
      %s29 = ssub.s32 128, 128
      %30 = vsyncadd [#allocation7], %s29
      %s32 = sshll.u32 [#allocation6], 4
      %s33 = int_to_ptr.vmem [resolvable:$true] %s32
      %35 = dma.hbm_to_vmem [thread:$0]  %s2, 128, %s33, [#allocation7]
    $region13: #{tpu_custom_call.1} parent=1 // pred_fallthru
      _
    // Predicated region
    $region14: #{tpu_custom_call.1} parent=1 // pred_check
      _
    $region15: #{tpu_custom_call.1} parent=1 // pred_check_branch
      %37 = sbr.rel (0) target = $region17
    $region16: #{tpu_custom_call.1} parent=1 // pred_region
      _
    $region17: #{tpu_custom_call.1} parent=1 // pred_fallthru
      _
    // Predicated region
    $region18: #{tpu_custom_call.1} parent=1 // pred_check
      _
    $region19: #{tpu_custom_call.1} parent=1 // pred_check_branch
      %39 = sbr.rel (0) target = $region21
    $region20: #{tpu_custom_call.1} parent=1 // pred_region
      _
    $region21: #{tpu_custom_call.1} parent=1 // pred_fallthru
      _
    // Predicated region
    $region22: #{tpu_custom_call.1} parent=1 // pred_check
      _
    $region23: #{tpu_custom_call.1} parent=1 // pred_check_branch
      %41 = sbr.rel (0) target = $region25
    $region24: #{tpu_custom_call.1} parent=1 // pred_region
      _
    $region25: #{tpu_custom_call.1} parent=1 // pred_fallthru
      _
    // Predicated region
    $region26: #{tpu_custom_call.1} parent=1 // pred_check
      _
    $region27: #{tpu_custom_call.1} parent=1 // pred_check_branch
      %43 = sbr.rel (0) target = $region29
    $region28: #{tpu_custom_call.1} parent=1 // pred_region
      _
    $region29: #{tpu_custom_call.1} parent=1 // pred_fallthru
      _
    // Predicated region
    $region30: #{tpu_custom_call.1} parent=1 // pred_check
      _
    $region31: #{tpu_custom_call.1} parent=1 // pred_check_branch
      %45 = sbr.rel (0) target = $region33
    $region32: #{tpu_custom_call.1} parent=1 // pred_region
      %46 = dma.done [#allocation5], 128
    $region33: #{tpu_custom_call.1} parent=1 // pred_fallthru
      _
    // Predicated region
    $region34: #{tpu_custom_call.1} parent=1 // pred_check
      _
    $region35: #{tpu_custom_call.1} parent=1 // pred_check_branch
      %48 = sbr.rel (0) target = $region37
    $region36: #{tpu_custom_call.1} parent=1 // pred_region
      %49 = dma.done [#allocation7], 128
    $region37: #{tpu_custom_call.1} parent=1 // pred_fallthru
      _
    %v50 = vld [vmem:[%s0] sm:$0xff]
    %v51 = vld [vmem:[%s0 + $0x8] sm:$0xff]
    %v52 = vld [vmem:[%s0 + $0x10] sm:$0xff]
    %v53 = vld [vmem:[%s0 + $0x18] sm:$0xff]
    %v54 = vld [vmem:[%s0 + $0x20] sm:$0xff]
    %v55 = vld [vmem:[%s0 + $0x28] sm:$0xff]
    %v56 = vld [vmem:[%s0 + $0x30] sm:$0xff]
    %v57 = vld [vmem:[%s0 + $0x38] sm:$0xff]
    %v58 = vld [vmem:[%s3] sm:$0xff]
    %v59 = vld [vmem:[%s3 + $0x8] sm:$0xff]
    %v60 = vld [vmem:[%s3 + $0x10] sm:$0xff]
    %v61 = vld [vmem:[%s3 + $0x18] sm:$0xff]
    %v62 = vld [vmem:[%s4] sm:$0x3]
    %v64 = vlaneseq
    %v65 = vshrl.u32 %v64, 7
    %v66 = vsub.s32 0, %v65
    %v67 = vrot.slane %v62, %v66
    %v68 = vlaneseq
    %v69 = vshrl.u32 %v68, 7
    %v70 = vsub.s32 1, %v69
    %v71 = vrot.slane %v62, %v70
    %vm74 = vcmask 130048
    %v76 = vsel %vm74, %v50, 0
    %v79 = vsel %vm74, %v51, 0
    %v82 = vsel %vm74, %v52, 0
    %v85 = vsel %vm74, %v53, 0
    %v88 = vsel %vm74, %v54, 0
    %v91 = vsel %vm74, %v55, 0
    %v94 = vsel %vm74, %v56, 0
    %v97 = vsel %vm74, %v57, 0
    %99 = vmatprep.subr.mxu0 %v59
    %100 = vmatpush1.msra.mxu0 %v58
    %101 = vmatprep.subr.mxu0 %v61
    %102 = vmatpush1.msra.mxu0 %v60
    %103 = vmatprep.subr.mxu0 0.0
    %104 = vmatpush1.msra.mxu0 0.0
    %105 = vmatprep.subr.mxu0 0.0
    %106 = vmatpush1.msra.mxu0 0.0
    %107 = vmatprep.subr.mxu0 0.0
    %108 = vmatpush1.msra.mxu0 0.0
    %109 = vmatprep.subr.mxu0 0.0
    %110 = vmatpush1.msra.mxu0 0.0
    %111 = vmatprep.subr.mxu0 0.0
    %112 = vmatpush1.msra.mxu0 0.0
    %113 = vmatprep.subr.mxu0 0.0
    %114 = vmatpush1.msra.mxu0 0.0
    %115 = vmatprep.subr.mxu0 0.0
    %116 = vmatpush1.msra.mxu0 0.0
    %117 = vmatprep.subr.mxu0 0.0
    %118 = vmatpush1.msra.mxu0 0.0
    %119 = vmatprep.subr.mxu0 0.0
    %120 = vmatpush1.msra.mxu0 0.0
    %121 = vmatprep.subr.mxu0 0.0
    %122 = vmatpush1.msra.mxu0 0.0
    %123 = vmatprep.subr.mxu0 0.0
    %124 = vmatpush1.msra.mxu0 0.0
    %125 = vmatprep.subr.mxu0 0.0
    %126 = vmatpush1.msra.mxu0 0.0
    %127 = vmatprep.subr.mxu0 0.0
    %128 = vmatpush1.msra.mxu0 0.0
    %129 = vmatprep.subr.mxu0 0.0
    %130 = vmatpush1.msra.mxu0 0.0
    %131 = vmatprep.subr.mxu0 0.0
    %132 = vmatpush1.msra.mxu0 0.0
    %133 = vmatprep.subr.mxu0 0.0
    %134 = vmatpush1.msra.mxu0 0.0
    %135 = vmatprep.subr.mxu0 0.0
    %136 = vmatpush1.msra.mxu0 0.0
    %137 = vmatprep.subr.mxu0 0.0
    %138 = vmatpush1.msra.mxu0 0.0
    %139 = vmatprep.subr.mxu0 0.0
    %140 = vmatpush1.msra.mxu0 0.0
    %141 = vmatprep.subr.mxu0 0.0
    %142 = vmatpush1.msra.mxu0 0.0
    %143 = vmatprep.subr.mxu0 0.0
    %144 = vmatpush1.msra.mxu0 0.0
    %145 = vmatprep.subr.mxu0 0.0
    %146 = vmatpush1.msra.mxu0 0.0
    %147 = vmatprep.subr.mxu0 0.0
    %148 = vmatpush1.msra.mxu0 0.0
    %149 = vmatprep.subr.mxu0 0.0
    %150 = vmatpush1.msra.mxu0 0.0
    %151 = vmatprep.subr.mxu0 0.0
    %152 = vmatpush1.msra.mxu0 0.0
    %153 = vmatprep.subr.mxu0 0.0
    %154 = vmatpush1.msra.mxu0 0.0
    %155 = vmatprep.subr.mxu0 0.0
    %156 = vmatpush1.msra.mxu0 0.0
    %157 = vmatprep.subr.mxu0 0.0
    %158 = vmatpush1.msra.mxu0 0.0
    %159 = vmatprep.subr.mxu0 0.0
    %160 = vmatpush1.msra.mxu0 0.0
    %161 = vmatprep.subr.mxu0 0.0
    %162 = vmatpush1.msra.mxu0 0.0
    %163 = vmatprep.mubr.f32.mxu0 0.0
    %164 = vmatmul.mubr.f32.gmra.mrb[0].mxu0 %v76
    %v165 = vpop.f32.mrb[0].mxu0
    %v166 = vadd.f32 %v67, %v165
    %v167 = vpop.f32.mrb[0].mxu0
    %v168 = vadd.f32 %v71, %v167
    %169 = vmatprep.mubr.f32.mxu0 0.0
    %170 = vmatmul.mubr.f32.gmra.mrb[0].mxu0 %v79
    %v171 = vpop.f32.mrb[0].mxu0
    %v172 = vadd.f32 %v67, %v171
    %v173 = vpop.f32.mrb[0].mxu0
    %v174 = vadd.f32 %v71, %v173
    %175 = vmatprep.mubr.f32.mxu0 0.0
    %176 = vmatmul.mubr.f32.gmra.mrb[0].mxu0 %v82
    %v177 = vpop.f32.mrb[0].mxu0
    %v178 = vadd.f32 %v67, %v177
    %v179 = vpop.f32.mrb[0].mxu0
    %v180 = vadd.f32 %v71, %v179
    %181 = vmatprep.mubr.f32.mxu0 0.0
    %182 = vmatmul.mubr.f32.gmra.mrb[0].mxu0 %v85
    %v183 = vpop.f32.mrb[0].mxu0
    %v184 = vadd.f32 %v67, %v183
    %v185 = vpop.f32.mrb[0].mxu0
    %v186 = vadd.f32 %v71, %v185
    %187 = vmatprep.mubr.f32.mxu0 0.0
    %188 = vmatmul.mubr.f32.gmra.mrb[0].mxu0 %v88
    %v189 = vpop.f32.mrb[0].mxu0
    %v190 = vadd.f32 %v67, %v189
    %v191 = vpop.f32.mrb[0].mxu0
    %v192 = vadd.f32 %v71, %v191
    %193 = vmatprep.mubr.f32.mxu0 0.0
    %194 = vmatmul.mubr.f32.gmra.mrb[0].mxu0 %v91
    %v195 = vpop.f32.mrb[0].mxu0
    %v196 = vadd.f32 %v67, %v195
    %v197 = vpop.f32.mrb[0].mxu0
    %v198 = vadd.f32 %v71, %v197
    %199 = vmatprep.mubr.f32.mxu0 0.0
    %200 = vmatmul.mubr.f32.gmra.mrb[0].mxu0 %v94
    %v201 = vpop.f32.mrb[0].mxu0
    %v202 = vadd.f32 %v67, %v201
    %v203 = vpop.f32.mrb[0].mxu0
    %v204 = vadd.f32 %v71, %v203
    %205 = vmatprep.mubr.f32.mxu0 0.0
    %206 = vmatmul.mubr.f32.gmra.mrb[0].mxu0 %v97
    %v207 = vpop.f32.mrb[0].mxu0
    %v208 = vadd.f32 %v67, %v207
    %v209 = vpop.f32.mrb[0].mxu0
    %v210 = vadd.f32 %v71, %v209
    %211 = vdwg.mxu0
    %212 = vst [vmem:[#allocation2] sm:$0xff] %v166
    %213 = vst [vmem:[#allocation2 + $0x8] sm:$0xff] %v168
    %214 = vst [vmem:[#allocation2 + $0x10] sm:$0xff] %v172
    %215 = vst [vmem:[#allocation2 + $0x18] sm:$0xff] %v174
    %216 = vst [vmem:[#allocation2 + $0x20] sm:$0xff] %v178
    %217 = vst [vmem:[#allocation2 + $0x28] sm:$0xff] %v180
    %218 = vst [vmem:[#allocation2 + $0x30] sm:$0xff] %v184
    %219 = vst [vmem:[#allocation2 + $0x38] sm:$0xff] %v186
    %220 = vst [vmem:[#allocation2 + $0x40] sm:$0xff] %v190
    %221 = vst [vmem:[#allocation2 + $0x48] sm:$0xff] %v192
    %222 = vst [vmem:[#allocation2 + $0x50] sm:$0xff] %v196
    %223 = vst [vmem:[#allocation2 + $0x58] sm:$0xff] %v198
    %224 = vst [vmem:[#allocation2 + $0x60] sm:$0xff] %v202
    %225 = vst [vmem:[#allocation2 + $0x68] sm:$0xff] %v204
    %226 = vst [vmem:[#allocation2 + $0x70] sm:$0xff] %v208
    %227 = vst [vmem:[#allocation2 + $0x78] sm:$0xff] %v210
    %v228 = vld [vmem:[%s5] sm:$0xff]
    %v229 = vld [vmem:[%s5 + $0x8] sm:$0xff]
    %v230 = vld [vmem:[%s5 + $0x10] sm:$0xff]
    %v231 = vld [vmem:[%s5 + $0x18] sm:$0xff]
    %v232 = vld [vmem:[%s6] sm:$0xff]
    %v233 = vld [vmem:[%s6 + $0x8] sm:$0xff]
    %v234 = vld [vmem:[%s6 + $0x10] sm:$0xff]
    %v235 = vld [vmem:[%s6 + $0x18] sm:$0xff]
    %v236 = vld [vmem:[#allocation4] sm:$0xff]
    %v237 = vld [vmem:[#allocation6] sm:$0xff]
    %s238 = smul.u32 0, 2
    %s239 = smul.addr %s238, 8
    %s240 = scalar_lea.vmem [#allocation2], %s239
    %v241 = vld [vmem:[%s240] sm:$0xff]
    %vm242 = vcmask 261120
    %v244 = vsel %vm242, %v236, 0
    %246 = vmatprep.subr.mxu0 0.0
    %247 = vmatpush1.msra.mxu0 %v228
    %248 = vmatprep.subr.mxu0 0.0
    %249 = vmatpush1.msra.mxu0 %v229
    %250 = vmatprep.subr.mxu0 0.0
    %251 = vmatpush1.msra.mxu0 %v230
    %252 = vmatprep.subr.mxu0 0.0
    %253 = vmatpush1.msra.mxu0 %v231
    %254 = vmatprep.subr.mxu0 0.0
    %255 = vmatpush1.msra.mxu0 0.0
    %256 = vmatprep.subr.mxu0 0.0
    %257 = vmatpush1.msra.mxu0 0.0
    %258 = vmatprep.subr.mxu0 0.0
    %259 = vmatpush1.msra.mxu0 0.0
    %260 = vmatprep.subr.mxu0 0.0
    %261 = vmatpush1.msra.mxu0 0.0
    %262 = vmatprep.subr.mxu0 0.0
    %263 = vmatpush1.msra.mxu0 0.0
    %264 = vmatprep.subr.mxu0 0.0
    %265 = vmatpush1.msra.mxu0 0.0
    %266 = vmatprep.subr.mxu0 0.0
    %267 = vmatpush1.msra.mxu0 0.0
    %268 = vmatprep.subr.mxu0 0.0
    %269 = vmatpush1.msra.mxu0 0.0
    %270 = vmatprep.subr.mxu0 0.0
    %271 = vmatpush1.msra.mxu0 0.0
    %272 = vmatprep.subr.mxu0 0.0
    %273 = vmatpush1.msra.mxu0 0.0
    %274 = vmatprep.subr.mxu0 0.0
    %275 = vmatpush1.msra.mxu0 0.0
    %276 = vmatprep.subr.mxu0 0.0
    %277 = vmatpush1.msra.mxu0 0.0
    %278 = vmatprep.subr.mxu0 0.0
    %279 = vmatpush1.msra.mxu0 0.0
    %280 = vmatprep.subr.mxu0 0.0
    %281 = vmatpush1.msra.mxu0 0.0
    %282 = vmatprep.subr.mxu0 0.0
    %283 = vmatpush1.msra.mxu0 0.0
    %284 = vmatprep.subr.mxu0 0.0
    %285 = vmatpush1.msra.mxu0 0.0
    %286 = vmatprep.subr.mxu0 0.0
    %287 = vmatpush1.msra.mxu0 0.0
    %288 = vmatprep.subr.mxu0 0.0
    %289 = vmatpush1.msra.mxu0 0.0
    %290 = vmatprep.subr.mxu0 0.0
    %291 = vmatpush1.msra.mxu0 0.0
    %292 = vmatprep.subr.mxu0 0.0
    %293 = vmatpush1.msra.mxu0 0.0
    %294 = vmatprep.subr.mxu0 0.0
    %295 = vmatpush1.msra.mxu0 0.0
    %296 = vmatprep.subr.mxu0 0.0
    %297 = vmatpush1.msra.mxu0 0.0
    %298 = vmatprep.subr.mxu0 0.0
    %299 = vmatpush1.msra.mxu0 0.0
    %300 = vmatprep.subr.mxu0 0.0
    %301 = vmatpush1.msra.mxu0 0.0
    %302 = vmatprep.subr.mxu0 0.0
    %303 = vmatpush1.msra.mxu0 0.0
    %304 = vmatprep.subr.mxu0 0.0
    %305 = vmatpush1.msra.mxu0 0.0
    %306 = vmatprep.subr.mxu0 0.0
    %307 = vmatpush1.msra.mxu0 0.0
    %308 = vmatprep.subr.mxu0 0.0
    %309 = vmatpush1.msra.mxu0 0.0
    %310 = vmatprep.mubr.f32.mxu0 0.0
    %311 = vmatmul.mubr.f32.gmra.mrb[0].mxu0 %v244
    %v312 = vpop.f32.mrb[0].mxu0
    %v313 = vadd.f32 0.0, %v312
    %v314 = vpop.f32.mrb[0].mxu0
    %315 = vdwg.mxu0
    %v316 = vadd.f32 %v241, %v313
    %s317 = smul.u32 7, 2
    %s318 = smul.addr %s317, 8
    %s319 = scalar_lea.vmem [#allocation2], %s318
    %v320 = vld [vmem:[%s319 + $0x8] sm:$0xff]
    %321 = vmatprep.subr.mxu0 0.0
    %322 = vmatpush1.msra.mxu0 %v232
    %323 = vmatprep.subr.mxu0 0.0
    %324 = vmatpush1.msra.mxu0 %v233
    %325 = vmatprep.subr.mxu0 0.0
    %326 = vmatpush1.msra.mxu0 %v234
    %327 = vmatprep.subr.mxu0 0.0
    %328 = vmatpush1.msra.mxu0 %v235
    %329 = vmatprep.subr.mxu0 0.0
    %330 = vmatpush1.msra.mxu0 0.0
    %331 = vmatprep.subr.mxu0 0.0
    %332 = vmatpush1.msra.mxu0 0.0
    %333 = vmatprep.subr.mxu0 0.0
    %334 = vmatpush1.msra.mxu0 0.0
    %335 = vmatprep.subr.mxu0 0.0
    %336 = vmatpush1.msra.mxu0 0.0
    %337 = vmatprep.subr.mxu0 0.0
    %338 = vmatpush1.msra.mxu0 0.0
    %339 = vmatprep.subr.mxu0 0.0
    %340 = vmatpush1.msra.mxu0 0.0
    %341 = vmatprep.subr.mxu0 0.0
    %342 = vmatpush1.msra.mxu0 0.0
    %343 = vmatprep.subr.mxu0 0.0
    %344 = vmatpush1.msra.mxu0 0.0
    %345 = vmatprep.subr.mxu0 0.0
    %346 = vmatpush1.msra.mxu0 0.0
    %347 = vmatprep.subr.mxu0 0.0
    %348 = vmatpush1.msra.mxu0 0.0
    %349 = vmatprep.subr.mxu0 0.0
    %350 = vmatpush1.msra.mxu0 0.0
    %351 = vmatprep.subr.mxu0 0.0
    %352 = vmatpush1.msra.mxu0 0.0
    %353 = vmatprep.subr.mxu0 0.0
    %354 = vmatpush1.msra.mxu0 0.0
    %355 = vmatprep.subr.mxu0 0.0
    %356 = vmatpush1.msra.mxu0 0.0
    %357 = vmatprep.subr.mxu0 0.0
    %358 = vmatpush1.msra.mxu0 0.0
    %359 = vmatprep.subr.mxu0 0.0
    %360 = vmatpush1.msra.mxu0 0.0
    %361 = vmatprep.subr.mxu0 0.0
    %362 = vmatpush1.msra.mxu0 0.0
    %363 = vmatprep.subr.mxu0 0.0
    %364 = vmatpush1.msra.mxu0 0.0
    %365 = vmatprep.subr.mxu0 0.0
    %366 = vmatpush1.msra.mxu0 0.0
    %367 = vmatprep.subr.mxu0 0.0
    %368 = vmatpush1.msra.mxu0 0.0
    %369 = vmatprep.subr.mxu0 0.0
    %370 = vmatpush1.msra.mxu0 0.0
    %371 = vmatprep.subr.mxu0 0.0
    %372 = vmatpush1.msra.mxu0 0.0
    %373 = vmatprep.subr.mxu0 0.0
    %374 = vmatpush1.msra.mxu0 0.0
    %375 = vmatprep.subr.mxu0 0.0
    %376 = vmatpush1.msra.mxu0 0.0
    %377 = vmatprep.subr.mxu0 0.0
    %378 = vmatpush1.msra.mxu0 0.0
    %379 = vmatprep.subr.mxu0 0.0
    %380 = vmatpush1.msra.mxu0 0.0
    %381 = vmatprep.subr.mxu0 0.0
    %382 = vmatpush1.msra.mxu0 0.0
    %383 = vmatprep.subr.mxu0 0.0
    %384 = vmatpush1.msra.mxu0 0.0
    %385 = vmatprep.mubr.f32.mxu0 0.0
    %386 = vmatmul.mubr.f32.gmra.mrb[0].mxu0 %v244
    %v387 = vpop.f32.mrb[0].mxu0
    %v388 = vadd.f32 0.0, %v387
    %v389 = vpop.f32.mrb[0].mxu0
    %390 = vdwg.mxu0
    %v391 = vadd.f32 %v320, %v388
    %v392 = vxor.u32 %v316, 2147483648
    %v393 = vmul.f32 %v392, 1.442695
    %v394 = vpow.pop %v393
    %v395 = vadd.f32 %v394, 1.0
    %v396 = vrcp.pop %v395
    %v397 = vmul.f32 1.0, %v396
    %v398 = vmul.f32 %v237, %v397
    %v399 = vtanh.pop %v316
    %401 = vrot.lane.b32.xlu0 %v399, 96
    %v402 = vpop.permute.xlu0 %401
    %v404 = vmul.f32 %v397, %v402
    %406 = vrot.lane.b32.xlu0 %v404, 96
    %v407 = vpop.permute.xlu0 %406
    %v409 = vadd.f32 %v398, %v407
    %v410 = vtanh.pop %v409
    %412 = vrot.lane.b32.xlu0 %v410, 96
    %v413 = vpop.permute.xlu0 %412
    %v415 = vmul.f32 %v316, %v413
    %v416 = vxor.u32 %v391, 2147483648
    %v417 = vmul.f32 %v416, 1.442695
    %v418 = vpow.pop %v417
    %v419 = vadd.f32 %v418, 1.0
    %v420 = vrcp.pop %v419
    %v421 = vmul.f32 1.0, %v420
    %v422 = vmul.f32 %v237, %v421
    %v423 = vtanh.pop %v391
    %425 = vrot.lane.b32.xlu0 %v423, 96
    %v426 = vpop.permute.xlu0 %425
    %v428 = vmul.f32 %v421, %v426
    %430 = vrot.lane.b32.xlu0 %v428, 96
    %v431 = vpop.permute.xlu0 %430
    %v433 = vadd.f32 %v422, %v431
    %v434 = vtanh.pop %v433
    %436 = vrot.lane.b32.xlu0 %v434, 96
    %v437 = vpop.permute.xlu0 %436
    %v439 = vmul.f32 %v391, %v437
    %441 = vrot.lane.b32.xlu0 %v415, 32
    %v442 = vpop.permute.xlu0 %441
    %444 = vst.msk [vmem:[%s7] sm:$0xff] %vm242, %v442
    %446 = vrot.lane.b32.xlu0 %v439, 32
    %v447 = vpop.permute.xlu0 %446
    %s449 = scalar_lea.vmem [#allocation3], 56
    %450 = vst.msk [vmem:[%s449] sm:$0xff] %vm242, %v447
    %s451 = smul.u32 1, 2
    %s452 = smul.addr %s451, 8
    %s453 = scalar_lea.vmem [#allocation2], %s452
    %v454 = vld [vmem:[%s453] sm:$0xff]
    %v455 = vsel %vm242, %v442, 0
    %457 = vmatprep.subr.mxu0 0.0
    %458 = vmatpush1.msra.mxu0 %v228
    %459 = vmatprep.subr.mxu0 0.0
    %460 = vmatpush1.msra.mxu0 %v229
    %461 = vmatprep.subr.mxu0 0.0
    %462 = vmatpush1.msra.mxu0 %v230
    %463 = vmatprep.subr.mxu0 0.0
    %464 = vmatpush1.msra.mxu0 %v231
    %465 = vmatprep.subr.mxu0 0.0
    %466 = vmatpush1.msra.mxu0 0.0
    %467 = vmatprep.subr.mxu0 0.0
    %468 = vmatpush1.msra.mxu0 0.0
    %469 = vmatprep.subr.mxu0 0.0
    %470 = vmatpush1.msra.mxu0 0.0
    %471 = vmatprep.subr.mxu0 0.0
    %472 = vmatpush1.msra.mxu0 0.0
    %473 = vmatprep.subr.mxu0 0.0
    %474 = vmatpush1.msra.mxu0 0.0
    %475 = vmatprep.subr.mxu0 0.0
    %476 = vmatpush1.msra.mxu0 0.0
    %477 = vmatprep.subr.mxu0 0.0
    %478 = vmatpush1.msra.mxu0 0.0
    %479 = vmatprep.subr.mxu0 0.0
    %480 = vmatpush1.msra.mxu0 0.0
    %481 = vmatprep.subr.mxu0 0.0
    %482 = vmatpush1.msra.mxu0 0.0
    %483 = vmatprep.subr.mxu0 0.0
    %484 = vmatpush1.msra.mxu0 0.0
    %485 = vmatprep.subr.mxu0 0.0
    %486 = vmatpush1.msra.mxu0 0.0
    %487 = vmatprep.subr.mxu0 0.0
    %488 = vmatpush1.msra.mxu0 0.0
    %489 = vmatprep.subr.mxu0 0.0
    %490 = vmatpush1.msra.mxu0 0.0
    %491 = vmatprep.subr.mxu0 0.0
    %492 = vmatpush1.msra.mxu0 0.0
    %493 = vmatprep.subr.mxu0 0.0
    %494 = vmatpush1.msra.mxu0 0.0
    %495 = vmatprep.subr.mxu0 0.0
    %496 = vmatpush1.msra.mxu0 0.0
    %497 = vmatprep.subr.mxu0 0.0
    %498 = vmatpush1.msra.mxu0 0.0
    %499 = vmatprep.subr.mxu0 0.0
    %500 = vmatpush1.msra.mxu0 0.0
    %501 = vmatprep.subr.mxu0 0.0
    %502 = vmatpush1.msra.mxu0 0.0
    %503 = vmatprep.subr.mxu0 0.0
    %504 = vmatpush1.msra.mxu0 0.0
    %505 = vmatprep.subr.mxu0 0.0
    %506 = vmatpush1.msra.mxu0 0.0
    %507 = vmatprep.subr.mxu0 0.0
    %508 = vmatpush1.msra.mxu0 0.0
    %509 = vmatprep.subr.mxu0 0.0
    %510 = vmatpush1.msra.mxu0 0.0
    %511 = vmatprep.subr.mxu0 0.0
    %512 = vmatpush1.msra.mxu0 0.0
    %513 = vmatprep.subr.mxu0 0.0
    %514 = vmatpush1.msra.mxu0 0.0
    %515 = vmatprep.subr.mxu0 0.0
    %516 = vmatpush1.msra.mxu0 0.0
    %517 = vmatprep.subr.mxu0 0.0
    %518 = vmatpush1.msra.mxu0 0.0
    %519 = vmatprep.subr.mxu0 0.0
    %520 = vmatpush1.msra.mxu0 0.0
    %521 = vmatprep.mubr.f32.mxu0 0.0
    %522 = vmatmul.mubr.f32.gmra.mrb[0].mxu0 %v455
    %v523 = vpop.f32.mrb[0].mxu0
    %v524 = vadd.f32 0.0, %v523
    %v525 = vpop.f32.mrb[0].mxu0
    %526 = vdwg.mxu0
    %v527 = vadd.f32 %v454, %v524
    %s528 = smul.u32 6, 2
    %s529 = smul.addr %s528, 8
    %s530 = scalar_lea.vmem [#allocation2], %s529
    %v531 = vld [vmem:[%s530 + $0x8] sm:$0xff]
    %v532 = vsel %vm242, %v447, 0
    %534 = vmatprep.subr.mxu0 0.0
    %535 = vmatpush1.msra.mxu0 %v232
    %536 = vmatprep.subr.mxu0 0.0
    %537 = vmatpush1.msra.mxu0 %v233
    %538 = vmatprep.subr.mxu0 0.0
    %539 = vmatpush1.msra.mxu0 %v234
    %540 = vmatprep.subr.mxu0 0.0
    %541 = vmatpush1.msra.mxu0 %v235
    %542 = vmatprep.subr.mxu0 0.0
    %543 = vmatpush1.msra.mxu0 0.0
    %544 = vmatprep.subr.mxu0 0.0
    %545 = vmatpush1.msra.mxu0 0.0
    %546 = vmatprep.subr.mxu0 0.0
    %547 = vmatpush1.msra.mxu0 0.0
    %548 = vmatprep.subr.mxu0 0.0
    %549 = vmatpush1.msra.mxu0 0.0
    %550 = vmatprep.subr.mxu0 0.0
    %551 = vmatpush1.msra.mxu0 0.0
    %552 = vmatprep.subr.mxu0 0.0
    %553 = vmatpush1.msra.mxu0 0.0
    %554 = vmatprep.subr.mxu0 0.0
    %555 = vmatpush1.msra.mxu0 0.0
    %556 = vmatprep.subr.mxu0 0.0
    %557 = vmatpush1.msra.mxu0 0.0
    %558 = vmatprep.subr.mxu0 0.0
    %559 = vmatpush1.msra.mxu0 0.0
    %560 = vmatprep.subr.mxu0 0.0
    %561 = vmatpush1.msra.mxu0 0.0
    %562 = vmatprep.subr.mxu0 0.0
    %563 = vmatpush1.msra.mxu0 0.0
    %564 = vmatprep.subr.mxu0 0.0
    %565 = vmatpush1.msra.mxu0 0.0
    %566 = vmatprep.subr.mxu0 0.0
    %567 = vmatpush1.msra.mxu0 0.0
    %568 = vmatprep.subr.mxu0 0.0
    %569 = vmatpush1.msra.mxu0 0.0
    %570 = vmatprep.subr.mxu0 0.0
    %571 = vmatpush1.msra.mxu0 0.0
    %572 = vmatprep.subr.mxu0 0.0
    %573 = vmatpush1.msra.mxu0 0.0
    %574 = vmatprep.subr.mxu0 0.0
    %575 = vmatpush1.msra.mxu0 0.0
    %576 = vmatprep.subr.mxu0 0.0
    %577 = vmatpush1.msra.mxu0 0.0
    %578 = vmatprep.subr.mxu0 0.0
    %579 = vmatpush1.msra.mxu0 0.0
    %580 = vmatprep.subr.mxu0 0.0
    %581 = vmatpush1.msra.mxu0 0.0
    %582 = vmatprep.subr.mxu0 0.0
    %583 = vmatpush1.msra.mxu0 0.0
    %584 = vmatprep.subr.mxu0 0.0
    %585 = vmatpush1.msra.mxu0 0.0
    %586 = vmatprep.subr.mxu0 0.0
    %587 = vmatpush1.msra.mxu0 0.0
    %588 = vmatprep.subr.mxu0 0.0
    %589 = vmatpush1.msra.mxu0 0.0
    %590 = vmatprep.subr.mxu0 0.0
    %591 = vmatpush1.msra.mxu0 0.0
    %592 = vmatprep.subr.mxu0 0.0
    %593 = vmatpush1.msra.mxu0 0.0
    %594 = vmatprep.subr.mxu0 0.0
    %595 = vmatpush1.msra.mxu0 0.0
    %596 = vmatprep.subr.mxu0 0.0
    %597 = vmatpush1.msra.mxu0 0.0
    %598 = vmatprep.mubr.f32.mxu0 0.0
    %599 = vmatmul.mubr.f32.gmra.mrb[0].mxu0 %v532
    %v600 = vpop.f32.mrb[0].mxu0
    %v601 = vadd.f32 0.0, %v600
    %v602 = vpop.f32.mrb[0].mxu0
    %603 = vdwg.mxu0
    %v604 = vadd.f32 %v531, %v601
    %v605 = vxor.u32 %v527, 2147483648
    %v606 = vmul.f32 %v605, 1.442695
    %v607 = vpow.pop %v606
    %v608 = vadd.f32 %v607, 1.0
    %v609 = vrcp.pop %v608
    %v610 = vmul.f32 1.0, %v609
    %v611 = vmul.f32 %v409, %v610
    %v612 = vtanh.pop %v527
    %614 = vrot.lane.b32.xlu0 %v612, 96
    %v615 = vpop.permute.xlu0 %614
    %v617 = vmul.f32 %v610, %v615
    %619 = vrot.lane.b32.xlu0 %v617, 96
    %v620 = vpop.permute.xlu0 %619
    %v622 = vadd.f32 %v611, %v620
    %v623 = vtanh.pop %v622
    %625 = vrot.lane.b32.xlu0 %v623, 96
    %v626 = vpop.permute.xlu0 %625
    %v628 = vmul.f32 %v527, %v626
    %v629 = vxor.u32 %v604, 2147483648
    %v630 = vmul.f32 %v629, 1.442695
    %v631 = vpow.pop %v630
    %v632 = vadd.f32 %v631, 1.0
    %v633 = vrcp.pop %v632
    %v634 = vmul.f32 1.0, %v633
    %v635 = vmul.f32 %v433, %v634
    %v636 = vtanh.pop %v604
    %638 = vrot.lane.b32.xlu0 %v636, 96
    %v639 = vpop.permute.xlu0 %638
    %v641 = vmul.f32 %v634, %v639
    %643 = vrot.lane.b32.xlu0 %v641, 96
    %v644 = vpop.permute.xlu0 %643
    %v646 = vadd.f32 %v635, %v644
    %v647 = vtanh.pop %v646
    %649 = vrot.lane.b32.xlu0 %v647, 96
    %v650 = vpop.permute.xlu0 %649
    %v652 = vmul.f32 %v604, %v650
    %654 = vrot.lane.b32.xlu0 %v628, 32
    %v655 = vpop.permute.xlu0 %654
    %s657 = scalar_lea.vmem %s7, 8
    %658 = vst.msk [vmem:[%s657] sm:$0xff] %vm242, %v655
    %660 = vrot.lane.b32.xlu0 %v652, 32
    %v661 = vpop.permute.xlu0 %660
    %s663 = scalar_lea.vmem [#allocation3], 48
    %664 = vst.msk [vmem:[%s663] sm:$0xff] %vm242, %v661
    %s665 = smul.u32 2, 2
    %s666 = smul.addr %s665, 8
    %s667 = scalar_lea.vmem [#allocation2], %s666
    %v668 = vld [vmem:[%s667] sm:$0xff]
    %v669 = vsel %vm242, %v655, 0
    %671 = vmatprep.subr.mxu0 0.0
    %672 = vmatpush1.msra.mxu0 %v228
    %673 = vmatprep.subr.mxu0 0.0
    %674 = vmatpush1.msra.mxu0 %v229
    %675 = vmatprep.subr.mxu0 0.0
    %676 = vmatpush1.msra.mxu0 %v230
    %677 = vmatprep.subr.mxu0 0.0
    %678 = vmatpush1.msra.mxu0 %v231
    %679 = vmatprep.subr.mxu0 0.0
    %680 = vmatpush1.msra.mxu0 0.0
    %681 = vmatprep.subr.mxu0 0.0
    %682 = vmatpush1.msra.mxu0 0.0
    %683 = vmatprep.subr.mxu0 0.0
    %684 = vmatpush1.msra.mxu0 0.0
    %685 = vmatprep.subr.mxu0 0.0
    %686 = vmatpush1.msra.mxu0 0.0
    %687 = vmatprep.subr.mxu0 0.0
    %688 = vmatpush1.msra.mxu0 0.0
    %689 = vmatprep.subr.mxu0 0.0
    %690 = vmatpush1.msra.mxu0 0.0
    %691 = vmatprep.subr.mxu0 0.0
    %692 = vmatpush1.msra.mxu0 0.0
    %693 = vmatprep.subr.mxu0 0.0
    %694 = vmatpush1.msra.mxu0 0.0
    %695 = vmatprep.subr.mxu0 0.0
    %696 = vmatpush1.msra.mxu0 0.0
    %697 = vmatprep.subr.mxu0 0.0
    %698 = vmatpush1.msra.mxu0 0.0
    %699 = vmatprep.subr.mxu0 0.0
    %700 = vmatpush1.msra.mxu0 0.0
    %701 = vmatprep.subr.mxu0 0.0
    %702 = vmatpush1.msra.mxu0 0.0
    %703 = vmatprep.subr.mxu0 0.0
    %704 = vmatpush1.msra.mxu0 0.0
    %705 = vmatprep.subr.mxu0 0.0
    %706 = vmatpush1.msra.mxu0 0.0
    %707 = vmatprep.subr.mxu0 0.0
    %708 = vmatpush1.msra.mxu0 0.0
    %709 = vmatprep.subr.mxu0 0.0
    %710 = vmatpush1.msra.mxu0 0.0
    %711 = vmatprep.subr.mxu0 0.0
    %712 = vmatpush1.msra.mxu0 0.0
    %713 = vmatprep.subr.mxu0 0.0
    %714 = vmatpush1.msra.mxu0 0.0
    %715 = vmatprep.subr.mxu0 0.0
    %716 = vmatpush1.msra.mxu0 0.0
    %717 = vmatprep.subr.mxu0 0.0
    %718 = vmatpush1.msra.mxu0 0.0
    %719 = vmatprep.subr.mxu0 0.0
    %720 = vmatpush1.msra.mxu0 0.0
    %721 = vmatprep.subr.mxu0 0.0
    %722 = vmatpush1.msra.mxu0 0.0
    %723 = vmatprep.subr.mxu0 0.0
    %724 = vmatpush1.msra.mxu0 0.0
    %725 = vmatprep.subr.mxu0 0.0
    %726 = vmatpush1.msra.mxu0 0.0
    %727 = vmatprep.subr.mxu0 0.0
    %728 = vmatpush1.msra.mxu0 0.0
    %729 = vmatprep.subr.mxu0 0.0
    %730 = vmatpush1.msra.mxu0 0.0
    %731 = vmatprep.subr.mxu0 0.0
    %732 = vmatpush1.msra.mxu0 0.0
    %733 = vmatprep.subr.mxu0 0.0
    %734 = vmatpush1.msra.mxu0 0.0
    %735 = vmatprep.mubr.f32.mxu0 0.0
    %736 = vmatmul.mubr.f32.gmra.mrb[0].mxu0 %v669
    %v737 = vpop.f32.mrb[0].mxu0
    %v738 = vadd.f32 0.0, %v737
    %v739 = vpop.f32.mrb[0].mxu0
    %740 = vdwg.mxu0
    %v741 = vadd.f32 %v668, %v738
    %s742 = smul.u32 5, 2
    %s743 = smul.addr %s742, 8
    %s744 = scalar_lea.vmem [#allocation2], %s743
    %v745 = vld [vmem:[%s744 + $0x8] sm:$0xff]
    %v746 = vsel %vm242, %v661, 0
    %748 = vmatprep.subr.mxu0 0.0
    %749 = vmatpush1.msra.mxu0 %v232
    %750 = vmatprep.subr.mxu0 0.0
    %751 = vmatpush1.msra.mxu0 %v233
    %752 = vmatprep.subr.mxu0 0.0
    %753 = vmatpush1.msra.mxu0 %v234
    %754 = vmatprep.subr.mxu0 0.0
    %755 = vmatpush1.msra.mxu0 %v235
    %756 = vmatprep.subr.mxu0 0.0
    %757 = vmatpush1.msra.mxu0 0.0
    %758 = vmatprep.subr.mxu0 0.0
    %759 = vmatpush1.msra.mxu0 0.0
    %760 = vmatprep.subr.mxu0 0.0
    %761 = vmatpush1.msra.mxu0 0.0
    %762 = vmatprep.subr.mxu0 0.0
    %763 = vmatpush1.msra.mxu0 0.0
    %764 = vmatprep.subr.mxu0 0.0
    %765 = vmatpush1.msra.mxu0 0.0
    %766 = vmatprep.subr.mxu0 0.0
    %767 = vmatpush1.msra.mxu0 0.0
    %768 = vmatprep.subr.mxu0 0.0
    %769 = vmatpush1.msra.mxu0 0.0
    %770 = vmatprep.subr.mxu0 0.0
    %771 = vmatpush1.msra.mxu0 0.0
    %772 = vmatprep.subr.mxu0 0.0
    %773 = vmatpush1.msra.mxu0 0.0
    %774 = vmatprep.subr.mxu0 0.0
    %775 = vmatpush1.msra.mxu0 0.0
    %776 = vmatprep.subr.mxu0 0.0
    %777 = vmatpush1.msra.mxu0 0.0
    %778 = vmatprep.subr.mxu0 0.0
    %779 = vmatpush1.msra.mxu0 0.0
    %780 = vmatprep.subr.mxu0 0.0
    %781 = vmatpush1.msra.mxu0 0.0
    %782 = vmatprep.subr.mxu0 0.0
    %783 = vmatpush1.msra.mxu0 0.0
    %784 = vmatprep.subr.mxu0 0.0
    %785 = vmatpush1.msra.mxu0 0.0
    %786 = vmatprep.subr.mxu0 0.0
    %787 = vmatpush1.msra.mxu0 0.0
    %788 = vmatprep.subr.mxu0 0.0
    %789 = vmatpush1.msra.mxu0 0.0
    %790 = vmatprep.subr.mxu0 0.0
    %791 = vmatpush1.msra.mxu0 0.0
    %792 = vmatprep.subr.mxu0 0.0
    %793 = vmatpush1.msra.mxu0 0.0
    %794 = vmatprep.subr.mxu0 0.0
    %795 = vmatpush1.msra.mxu0 0.0
    %796 = vmatprep.subr.mxu0 0.0
    %797 = vmatpush1.msra.mxu0 0.0
    %798 = vmatprep.subr.mxu0 0.0
    %799 = vmatpush1.msra.mxu0 0.0
    %800 = vmatprep.subr.mxu0 0.0
    %801 = vmatpush1.msra.mxu0 0.0
    %802 = vmatprep.subr.mxu0 0.0
    %803 = vmatpush1.msra.mxu0 0.0
    %804 = vmatprep.subr.mxu0 0.0
    %805 = vmatpush1.msra.mxu0 0.0
    %806 = vmatprep.subr.mxu0 0.0
    %807 = vmatpush1.msra.mxu0 0.0
    %808 = vmatprep.subr.mxu0 0.0
    %809 = vmatpush1.msra.mxu0 0.0
    %810 = vmatprep.subr.mxu0 0.0
    %811 = vmatpush1.msra.mxu0 0.0
    %812 = vmatprep.mubr.f32.mxu0 0.0
    %813 = vmatmul.mubr.f32.gmra.mrb[0].mxu0 %v746
    %v814 = vpop.f32.mrb[0].mxu0
    %v815 = vadd.f32 0.0, %v814
    %v816 = vpop.f32.mrb[0].mxu0
    %817 = vdwg.mxu0
    %v818 = vadd.f32 %v745, %v815
    %v819 = vxor.u32 %v741, 2147483648
    %v820 = vmul.f32 %v819, 1.442695
    %v821 = vpow.pop %v820
    %v822 = vadd.f32 %v821, 1.0
    %v823 = vrcp.pop %v822
    %v824 = vmul.f32 1.0, %v823
    %v825 = vmul.f32 %v622, %v824
    %v826 = vtanh.pop %v741
    %828 = vrot.lane.b32.xlu0 %v826, 96
    %v829 = vpop.permute.xlu0 %828
    %v831 = vmul.f32 %v824, %v829
    %833 = vrot.lane.b32.xlu0 %v831, 96
    %v834 = vpop.permute.xlu0 %833
    %v836 = vadd.f32 %v825, %v834
    %v837 = vtanh.pop %v836
    %839 = vrot.lane.b32.xlu0 %v837, 96
    %v840 = vpop.permute.xlu0 %839
    %v842 = vmul.f32 %v741, %v840
    %v843 = vxor.u32 %v818, 2147483648
    %v844 = vmul.f32 %v843, 1.442695
    %v845 = vpow.pop %v844
    %v846 = vadd.f32 %v845, 1.0
    %v847 = vrcp.pop %v846
    %v848 = vmul.f32 1.0, %v847
    %v849 = vmul.f32 %v646, %v848
    %v850 = vtanh.pop %v818
    %852 = vrot.lane.b32.xlu0 %v850, 96
    %v853 = vpop.permute.xlu0 %852
    %v855 = vmul.f32 %v848, %v853
    %857 = vrot.lane.b32.xlu0 %v855, 96
    %v858 = vpop.permute.xlu0 %857
    %v860 = vadd.f32 %v849, %v858
    %v861 = vtanh.pop %v860
    %863 = vrot.lane.b32.xlu0 %v861, 96
    %v864 = vpop.permute.xlu0 %863
    %v866 = vmul.f32 %v818, %v864
    %868 = vrot.lane.b32.xlu0 %v842, 32
    %v869 = vpop.permute.xlu0 %868
    %s871 = scalar_lea.vmem %s7, 16
    %872 = vst.msk [vmem:[%s871] sm:$0xff] %vm242, %v869
    %874 = vrot.lane.b32.xlu0 %v866, 32
    %v875 = vpop.permute.xlu0 %874
    %s877 = scalar_lea.vmem [#allocation3], 40
    %878 = vst.msk [vmem:[%s877] sm:$0xff] %vm242, %v875
    %s879 = smul.u32 3, 2
    %s880 = smul.addr %s879, 8
    %s881 = scalar_lea.vmem [#allocation2], %s880
    %v882 = vld [vmem:[%s881] sm:$0xff]
    %v883 = vsel %vm242, %v869, 0
    %885 = vmatprep.subr.mxu0 0.0
    %886 = vmatpush1.msra.mxu0 %v228
    %887 = vmatprep.subr.mxu0 0.0
    %888 = vmatpush1.msra.mxu0 %v229
    %889 = vmatprep.subr.mxu0 0.0
    %890 = vmatpush1.msra.mxu0 %v230
    %891 = vmatprep.subr.mxu0 0.0
    %892 = vmatpush1.msra.mxu0 %v231
    %893 = vmatprep.subr.mxu0 0.0
    %894 = vmatpush1.msra.mxu0 0.0
    %895 = vmatprep.subr.mxu0 0.0
    %896 = vmatpush1.msra.mxu0 0.0
    %897 = vmatprep.subr.mxu0 0.0
    %898 = vmatpush1.msra.mxu0 0.0
    %899 = vmatprep.subr.mxu0 0.0
    %900 = vmatpush1.msra.mxu0 0.0
    %901 = vmatprep.subr.mxu0 0.0
    %902 = vmatpush1.msra.mxu0 0.0
    %903 = vmatprep.subr.mxu0 0.0
    %904 = vmatpush1.msra.mxu0 0.0
    %905 = vmatprep.subr.mxu0 0.0
    %906 = vmatpush1.msra.mxu0 0.0
    %907 = vmatprep.subr.mxu0 0.0
    %908 = vmatpush1.msra.mxu0 0.0
    %909 = vmatprep.subr.mxu0 0.0
    %910 = vmatpush1.msra.mxu0 0.0
    %911 = vmatprep.subr.mxu0 0.0
    %912 = vmatpush1.msra.mxu0 0.0
    %913 = vmatprep.subr.mxu0 0.0
    %914 = vmatpush1.msra.mxu0 0.0
    %915 = vmatprep.subr.mxu0 0.0
    %916 = vmatpush1.msra.mxu0 0.0
    %917 = vmatprep.subr.mxu0 0.0
    %918 = vmatpush1.msra.mxu0 0.0
    %919 = vmatprep.subr.mxu0 0.0
    %920 = vmatpush1.msra.mxu0 0.0
    %921 = vmatprep.subr.mxu0 0.0
    %922 = vmatpush1.msra.mxu0 0.0
    %923 = vmatprep.subr.mxu0 0.0
    %924 = vmatpush1.msra.mxu0 0.0
    %925 = vmatprep.subr.mxu0 0.0
    %926 = vmatpush1.msra.mxu0 0.0
    %927 = vmatprep.subr.mxu0 0.0
    %928 = vmatpush1.msra.mxu0 0.0
    %929 = vmatprep.subr.mxu0 0.0
    %930 = vmatpush1.msra.mxu0 0.0
    %931 = vmatprep.subr.mxu0 0.0
    %932 = vmatpush1.msra.mxu0 0.0
    %933 = vmatprep.subr.mxu0 0.0
    %934 = vmatpush1.msra.mxu0 0.0
    %935 = vmatprep.subr.mxu0 0.0
    %936 = vmatpush1.msra.mxu0 0.0
    %937 = vmatprep.subr.mxu0 0.0
    %938 = vmatpush1.msra.mxu0 0.0
    %939 = vmatprep.subr.mxu0 0.0
    %940 = vmatpush1.msra.mxu0 0.0
    %941 = vmatprep.subr.mxu0 0.0
    %942 = vmatpush1.msra.mxu0 0.0
    %943 = vmatprep.subr.mxu0 0.0
    %944 = vmatpush1.msra.mxu0 0.0
    %945 = vmatprep.subr.mxu0 0.0
    %946 = vmatpush1.msra.mxu0 0.0
    %947 = vmatprep.subr.mxu0 0.0
    %948 = vmatpush1.msra.mxu0 0.0
    %949 = vmatprep.mubr.f32.mxu0 0.0
    %950 = vmatmul.mubr.f32.gmra.mrb[0].mxu0 %v883
    %v951 = vpop.f32.mrb[0].mxu0
    %v952 = vadd.f32 0.0, %v951
    %v953 = vpop.f32.mrb[0].mxu0
    %954 = vdwg.mxu0
    %v955 = vadd.f32 %v882, %v952
    %s956 = smul.u32 4, 2
    %s957 = smul.addr %s956, 8
    %s958 = scalar_lea.vmem [#allocation2], %s957
    %v959 = vld [vmem:[%s958 + $0x8] sm:$0xff]
    %v960 = vsel %vm242, %v875, 0
    %962 = vmatprep.subr.mxu0 0.0
    %963 = vmatpush1.msra.mxu0 %v232
    %964 = vmatprep.subr.mxu0 0.0
    %965 = vmatpush1.msra.mxu0 %v233
    %966 = vmatprep.subr.mxu0 0.0
    %967 = vmatpush1.msra.mxu0 %v234
    %968 = vmatprep.subr.mxu0 0.0
    %969 = vmatpush1.msra.mxu0 %v235
    %970 = vmatprep.subr.mxu0 0.0
    %971 = vmatpush1.msra.mxu0 0.0
    %972 = vmatprep.subr.mxu0 0.0
    %973 = vmatpush1.msra.mxu0 0.0
    %974 = vmatprep.subr.mxu0 0.0
    %975 = vmatpush1.msra.mxu0 0.0
    %976 = vmatprep.subr.mxu0 0.0
    %977 = vmatpush1.msra.mxu0 0.0
    %978 = vmatprep.subr.mxu0 0.0
    %979 = vmatpush1.msra.mxu0 0.0
    %980 = vmatprep.subr.mxu0 0.0
    %981 = vmatpush1.msra.mxu0 0.0
    %982 = vmatprep.subr.mxu0 0.0
    %983 = vmatpush1.msra.mxu0 0.0
    %984 = vmatprep.subr.mxu0 0.0
    %985 = vmatpush1.msra.mxu0 0.0
    %986 = vmatprep.subr.mxu0 0.0
    %987 = vmatpush1.msra.mxu0 0.0
    %988 = vmatprep.subr.mxu0 0.0
    %989 = vmatpush1.msra.mxu0 0.0
    %990 = vmatprep.subr.mxu0 0.0
    %991 = vmatpush1.msra.mxu0 0.0
    %992 = vmatprep.subr.mxu0 0.0
    %993 = vmatpush1.msra.mxu0 0.0
    %994 = vmatprep.subr.mxu0 0.0
    %995 = vmatpush1.msra.mxu0 0.0
    %996 = vmatprep.subr.mxu0 0.0
    %997 = vmatpush1.msra.mxu0 0.0
    %998 = vmatprep.subr.mxu0 0.0
    %999 = vmatpush1.msra.mxu0 0.0
    %1000 = vmatprep.subr.mxu0 0.0
    %1001 = vmatpush1.msra.mxu0 0.0
    %1002 = vmatprep.subr.mxu0 0.0
    %1003 = vmatpush1.msra.mxu0 0.0
    %1004 = vmatprep.subr.mxu0 0.0
    %1005 = vmatpush1.msra.mxu0 0.0
    %1006 = vmatprep.subr.mxu0 0.0
    %1007 = vmatpush1.msra.mxu0 0.0
    %1008 = vmatprep.subr.mxu0 0.0
    %1009 = vmatpush1.msra.mxu0 0.0
    %1010 = vmatprep.subr.mxu0 0.0
    %1011 = vmatpush1.msra.mxu0 0.0
    %1012 = vmatprep.subr.mxu0 0.0
    %1013 = vmatpush1.msra.mxu0 0.0
    %1014 = vmatprep.subr.mxu0 0.0
    %1015 = vmatpush1.msra.mxu0 0.0
    %1016 = vmatprep.subr.mxu0 0.0
    %1017 = vmatpush1.msra.mxu0 0.0
    %1018 = vmatprep.subr.mxu0 0.0
    %1019 = vmatpush1.msra.mxu0 0.0
    %1020 = vmatprep.subr.mxu0 0.0
    %1021 = vmatpush1.msra.mxu0 0.0
    %1022 = vmatprep.subr.mxu0 0.0
    %1023 = vmatpush1.msra.mxu0 0.0
    %1024 = vmatprep.subr.mxu0 0.0
    %1025 = vmatpush1.msra.mxu0 0.0
    %1026 = vmatprep.mubr.f32.mxu0 0.0
    %1027 = vmatmul.mubr.f32.gmra.mrb[0].mxu0 %v960
    %v1028 = vpop.f32.mrb[0].mxu0
    %v1029 = vadd.f32 0.0, %v1028
    %v1030 = vpop.f32.mrb[0].mxu0
    %1031 = vdwg.mxu0
    %v1032 = vadd.f32 %v959, %v1029
    %v1033 = vxor.u32 %v955, 2147483648
    %v1034 = vmul.f32 %v1033, 1.442695
    %v1035 = vpow.pop %v1034
    %v1036 = vadd.f32 %v1035, 1.0
    %v1037 = vrcp.pop %v1036
    %v1038 = vmul.f32 1.0, %v1037
    %v1039 = vmul.f32 %v836, %v1038
    %v1040 = vtanh.pop %v955
    %1042 = vrot.lane.b32.xlu0 %v1040, 96
    %v1043 = vpop.permute.xlu0 %1042
    %v1045 = vmul.f32 %v1038, %v1043
    %1047 = vrot.lane.b32.xlu0 %v1045, 96
    %v1048 = vpop.permute.xlu0 %1047
    %v1050 = vadd.f32 %v1039, %v1048
    %v1051 = vtanh.pop %v1050
    %1053 = vrot.lane.b32.xlu0 %v1051, 96
    %v1054 = vpop.permute.xlu0 %1053
    %v1056 = vmul.f32 %v955, %v1054
    %v1057 = vxor.u32 %v1032, 2147483648
    %v1058 = vmul.f32 %v1057, 1.442695
    %v1059 = vpow.pop %v1058
    %v1060 = vadd.f32 %v1059, 1.0
    %v1061 = vrcp.pop %v1060
    %v1062 = vmul.f32 1.0, %v1061
    %v1063 = vmul.f32 %v860, %v1062
    %v1064 = vtanh.pop %v1032
    %1066 = vrot.lane.b32.xlu0 %v1064, 96
    %v1067 = vpop.permute.xlu0 %1066
    %v1069 = vmul.f32 %v1062, %v1067
    %1071 = vrot.lane.b32.xlu0 %v1069, 96
    %v1072 = vpop.permute.xlu0 %1071
    %v1074 = vadd.f32 %v1063, %v1072
    %v1075 = vtanh.pop %v1074
    %1077 = vrot.lane.b32.xlu0 %v1075, 96
    %v1078 = vpop.permute.xlu0 %1077
    %v1080 = vmul.f32 %v1032, %v1078
    %1082 = vrot.lane.b32.xlu0 %v1056, 32
    %v1083 = vpop.permute.xlu0 %1082
    %s1085 = scalar_lea.vmem %s7, 24
    %1086 = vst.msk [vmem:[%s1085] sm:$0xff] %vm242, %v1083
    %1088 = vrot.lane.b32.xlu0 %v1080, 32
    %v1089 = vpop.permute.xlu0 %1088
    %s1091 = scalar_lea.vmem [#allocation3], 32
    %1092 = vst.msk [vmem:[%s1091] sm:$0xff] %vm242, %v1089
    %v1093 = vld [vmem:[%s958] sm:$0xff]
    %v1094 = vsel %vm242, %v1083, 0
    %1096 = vmatprep.subr.mxu0 0.0
    %1097 = vmatpush1.msra.mxu0 %v228
    %1098 = vmatprep.subr.mxu0 0.0
    %1099 = vmatpush1.msra.mxu0 %v229
    %1100 = vmatprep.subr.mxu0 0.0
    %1101 = vmatpush1.msra.mxu0 %v230
    %1102 = vmatprep.subr.mxu0 0.0
    %1103 = vmatpush1.msra.mxu0 %v231
    %1104 = vmatprep.subr.mxu0 0.0
    %1105 = vmatpush1.msra.mxu0 0.0
    %1106 = vmatprep.subr.mxu0 0.0
    %1107 = vmatpush1.msra.mxu0 0.0
    %1108 = vmatprep.subr.mxu0 0.0
    %1109 = vmatpush1.msra.mxu0 0.0
    %1110 = vmatprep.subr.mxu0 0.0
    %1111 = vmatpush1.msra.mxu0 0.0
    %1112 = vmatprep.subr.mxu0 0.0
    %1113 = vmatpush1.msra.mxu0 0.0
    %1114 = vmatprep.subr.mxu0 0.0
    %1115 = vmatpush1.msra.mxu0 0.0
    %1116 = vmatprep.subr.mxu0 0.0
    %1117 = vmatpush1.msra.mxu0 0.0
    %1118 = vmatprep.subr.mxu0 0.0
    %1119 = vmatpush1.msra.mxu0 0.0
    %1120 = vmatprep.subr.mxu0 0.0
    %1121 = vmatpush1.msra.mxu0 0.0
    %1122 = vmatprep.subr.mxu0 0.0
    %1123 = vmatpush1.msra.mxu0 0.0
    %1124 = vmatprep.subr.mxu0 0.0
    %1125 = vmatpush1.msra.mxu0 0.0
    %1126 = vmatprep.subr.mxu0 0.0
    %1127 = vmatpush1.msra.mxu0 0.0
    %1128 = vmatprep.subr.mxu0 0.0
    %1129 = vmatpush1.msra.mxu0 0.0
    %1130 = vmatprep.subr.mxu0 0.0
    %1131 = vmatpush1.msra.mxu0 0.0
    %1132 = vmatprep.subr.mxu0 0.0
    %1133 = vmatpush1.msra.mxu0 0.0
    %1134 = vmatprep.subr.mxu0 0.0
    %1135 = vmatpush1.msra.mxu0 0.0
    %1136 = vmatprep.subr.mxu0 0.0
    %1137 = vmatpush1.msra.mxu0 0.0
    %1138 = vmatprep.subr.mxu0 0.0
    %1139 = vmatpush1.msra.mxu0 0.0
    %1140 = vmatprep.subr.mxu0 0.0
    %1141 = vmatpush1.msra.mxu0 0.0
    %1142 = vmatprep.subr.mxu0 0.0
    %1143 = vmatpush1.msra.mxu0 0.0
    %1144 = vmatprep.subr.mxu0 0.0
    %1145 = vmatpush1.msra.mxu0 0.0
    %1146 = vmatprep.subr.mxu0 0.0
    %1147 = vmatpush1.msra.mxu0 0.0
    %1148 = vmatprep.subr.mxu0 0.0
    %1149 = vmatpush1.msra.mxu0 0.0
    %1150 = vmatprep.subr.mxu0 0.0
    %1151 = vmatpush1.msra.mxu0 0.0
    %1152 = vmatprep.subr.mxu0 0.0
    %1153 = vmatpush1.msra.mxu0 0.0
    %1154 = vmatprep.subr.mxu0 0.0
    %1155 = vmatpush1.msra.mxu0 0.0
    %1156 = vmatprep.subr.mxu0 0.0
    %1157 = vmatpush1.msra.mxu0 0.0
    %1158 = vmatprep.subr.mxu0 0.0
    %1159 = vmatpush1.msra.mxu0 0.0
    %1160 = vmatprep.mubr.f32.mxu0 0.0
    %1161 = vmatmul.mubr.f32.gmra.mrb[0].mxu0 %v1094
    %v1162 = vpop.f32.mrb[0].mxu0
    %v1163 = vadd.f32 0.0, %v1162
    %v1164 = vpop.f32.mrb[0].mxu0
    %1165 = vdwg.mxu0
    %v1166 = vadd.f32 %v1093, %v1163
    %v1167 = vld [vmem:[%s881 + $0x8] sm:$0xff]
    %v1168 = vsel %vm242, %v1089, 0
    %1170 = vmatprep.subr.mxu0 0.0
    %1171 = vmatpush1.msra.mxu0 %v232
    %1172 = vmatprep.subr.mxu0 0.0
    %1173 = vmatpush1.msra.mxu0 %v233
    %1174 = vmatprep.subr.mxu0 0.0
    %1175 = vmatpush1.msra.mxu0 %v234
    %1176 = vmatprep.subr.mxu0 0.0
    %1177 = vmatpush1.msra.mxu0 %v235
    %1178 = vmatprep.subr.mxu0 0.0
    %1179 = vmatpush1.msra.mxu0 0.0
    %1180 = vmatprep.subr.mxu0 0.0
    %1181 = vmatpush1.msra.mxu0 0.0
    %1182 = vmatprep.subr.mxu0 0.0
    %1183 = vmatpush1.msra.mxu0 0.0
    %1184 = vmatprep.subr.mxu0 0.0
    %1185 = vmatpush1.msra.mxu0 0.0
    %1186 = vmatprep.subr.mxu0 0.0
    %1187 = vmatpush1.msra.mxu0 0.0
    %1188 = vmatprep.subr.mxu0 0.0
    %1189 = vmatpush1.msra.mxu0 0.0
    %1190 = vmatprep.subr.mxu0 0.0
    %1191 = vmatpush1.msra.mxu0 0.0
    %1192 = vmatprep.subr.mxu0 0.0
    %1193 = vmatpush1.msra.mxu0 0.0
    %1194 = vmatprep.subr.mxu0 0.0
    %1195 = vmatpush1.msra.mxu0 0.0
    %1196 = vmatprep.subr.mxu0 0.0
    %1197 = vmatpush1.msra.mxu0 0.0
    %1198 = vmatprep.subr.mxu0 0.0
    %1199 = vmatpush1.msra.mxu0 0.0
    %1200 = vmatprep.subr.mxu0 0.0
    %1201 = vmatpush1.msra.mxu0 0.0
    %1202 = vmatprep.subr.mxu0 0.0
    %1203 = vmatpush1.msra.mxu0 0.0
    %1204 = vmatprep.subr.mxu0 0.0
    %1205 = vmatpush1.msra.mxu0 0.0
    %1206 = vmatprep.subr.mxu0 0.0
    %1207 = vmatpush1.msra.mxu0 0.0
    %1208 = vmatprep.subr.mxu0 0.0
    %1209 = vmatpush1.msra.mxu0 0.0
    %1210 = vmatprep.subr.mxu0 0.0
    %1211 = vmatpush1.msra.mxu0 0.0
    %1212 = vmatprep.subr.mxu0 0.0
    %1213 = vmatpush1.msra.mxu0 0.0
    %1214 = vmatprep.subr.mxu0 0.0
    %1215 = vmatpush1.msra.mxu0 0.0
    %1216 = vmatprep.subr.mxu0 0.0
    %1217 = vmatpush1.msra.mxu0 0.0
    %1218 = vmatprep.subr.mxu0 0.0
    %1219 = vmatpush1.msra.mxu0 0.0
    %1220 = vmatprep.subr.mxu0 0.0
    %1221 = vmatpush1.msra.mxu0 0.0
    %1222 = vmatprep.subr.mxu0 0.0
    %1223 = vmatpush1.msra.mxu0 0.0
    %1224 = vmatprep.subr.mxu0 0.0
    %1225 = vmatpush1.msra.mxu0 0.0
    %1226 = vmatprep.subr.mxu0 0.0
    %1227 = vmatpush1.msra.mxu0 0.0
    %1228 = vmatprep.subr.mxu0 0.0
    %1229 = vmatpush1.msra.mxu0 0.0
    %1230 = vmatprep.subr.mxu0 0.0
    %1231 = vmatpush1.msra.mxu0 0.0
    %1232 = vmatprep.subr.mxu0 0.0
    %1233 = vmatpush1.msra.mxu0 0.0
    %1234 = vmatprep.mubr.f32.mxu0 0.0
    %1235 = vmatmul.mubr.f32.gmra.mrb[0].mxu0 %v1168
    %v1236 = vpop.f32.mrb[0].mxu0
    %v1237 = vadd.f32 0.0, %v1236
    %v1238 = vpop.f32.mrb[0].mxu0
    %1239 = vdwg.mxu0
    %v1240 = vadd.f32 %v1167, %v1237
    %v1241 = vxor.u32 %v1166, 2147483648
    %v1242 = vmul.f32 %v1241, 1.442695
    %v1243 = vpow.pop %v1242
    %v1244 = vadd.f32 %v1243, 1.0
    %v1245 = vrcp.pop %v1244
    %v1246 = vmul.f32 1.0, %v1245
    %v1247 = vmul.f32 %v1050, %v1246
    %v1248 = vtanh.pop %v1166
    %1250 = vrot.lane.b32.xlu0 %v1248, 96
    %v1251 = vpop.permute.xlu0 %1250
    %v1253 = vmul.f32 %v1246, %v1251
    %1255 = vrot.lane.b32.xlu0 %v1253, 96
    %v1256 = vpop.permute.xlu0 %1255
    %v1258 = vadd.f32 %v1247, %v1256
    %v1259 = vtanh.pop %v1258
    %1261 = vrot.lane.b32.xlu0 %v1259, 96
    %v1262 = vpop.permute.xlu0 %1261
    %v1264 = vmul.f32 %v1166, %v1262
    %v1265 = vxor.u32 %v1240, 2147483648
    %v1266 = vmul.f32 %v1265, 1.442695
    %v1267 = vpow.pop %v1266
    %v1268 = vadd.f32 %v1267, 1.0
    %v1269 = vrcp.pop %v1268
    %v1270 = vmul.f32 1.0, %v1269
    %v1271 = vmul.f32 %v1074, %v1270
    %v1272 = vtanh.pop %v1240
    %1274 = vrot.lane.b32.xlu0 %v1272, 96
    %v1275 = vpop.permute.xlu0 %1274
    %v1277 = vmul.f32 %v1270, %v1275
    %1279 = vrot.lane.b32.xlu0 %v1277, 96
    %v1280 = vpop.permute.xlu0 %1279
    %v1282 = vadd.f32 %v1271, %v1280
    %v1283 = vtanh.pop %v1282
    %1285 = vrot.lane.b32.xlu0 %v1283, 96
    %v1286 = vpop.permute.xlu0 %1285
    %v1288 = vmul.f32 %v1240, %v1286
    %1290 = vrot.lane.b32.xlu0 %v1264, 32
    %v1291 = vpop.permute.xlu0 %1290
    %s1293 = scalar_lea.vmem %s7, 32
    %1294 = vst.msk [vmem:[%s1293] sm:$0xff] %vm242, %v1291
    %1296 = vrot.lane.b32.xlu0 %v1288, 32
    %v1297 = vpop.permute.xlu0 %1296
    %s1299 = scalar_lea.vmem [#allocation3], 24
    %1300 = vst.msk [vmem:[%s1299] sm:$0xff] %vm242, %v1297
    %v1301 = vld [vmem:[%s744] sm:$0xff]
    %v1302 = vsel %vm242, %v1291, 0
    %1304 = vmatprep.subr.mxu0 0.0
    %1305 = vmatpush1.msra.mxu0 %v228
    %1306 = vmatprep.subr.mxu0 0.0
    %1307 = vmatpush1.msra.mxu0 %v229
    %1308 = vmatprep.subr.mxu0 0.0
    %1309 = vmatpush1.msra.mxu0 %v230
    %1310 = vmatprep.subr.mxu0 0.0
    %1311 = vmatpush1.msra.mxu0 %v231
    %1312 = vmatprep.subr.mxu0 0.0
    %1313 = vmatpush1.msra.mxu0 0.0
    %1314 = vmatprep.subr.mxu0 0.0
    %1315 = vmatpush1.msra.mxu0 0.0
    %1316 = vmatprep.subr.mxu0 0.0
    %1317 = vmatpush1.msra.mxu0 0.0
    %1318 = vmatprep.subr.mxu0 0.0
    %1319 = vmatpush1.msra.mxu0 0.0
    %1320 = vmatprep.subr.mxu0 0.0
    %1321 = vmatpush1.msra.mxu0 0.0
    %1322 = vmatprep.subr.mxu0 0.0
    %1323 = vmatpush1.msra.mxu0 0.0
    %1324 = vmatprep.subr.mxu0 0.0
    %1325 = vmatpush1.msra.mxu0 0.0
    %1326 = vmatprep.subr.mxu0 0.0
    %1327 = vmatpush1.msra.mxu0 0.0
    %1328 = vmatprep.subr.mxu0 0.0
    %1329 = vmatpush1.msra.mxu0 0.0
    %1330 = vmatprep.subr.mxu0 0.0
    %1331 = vmatpush1.msra.mxu0 0.0
    %1332 = vmatprep.subr.mxu0 0.0
    %1333 = vmatpush1.msra.mxu0 0.0
    %1334 = vmatprep.subr.mxu0 0.0
    %1335 = vmatpush1.msra.mxu0 0.0
    %1336 = vmatprep.subr.mxu0 0.0
    %1337 = vmatpush1.msra.mxu0 0.0
    %1338 = vmatprep.subr.mxu0 0.0
    %1339 = vmatpush1.msra.mxu0 0.0
    %1340 = vmatprep.subr.mxu0 0.0
    %1341 = vmatpush1.msra.mxu0 0.0
    %1342 = vmatprep.subr.mxu0 0.0
    %1343 = vmatpush1.msra.mxu0 0.0
    %1344 = vmatprep.subr.mxu0 0.0
    %1345 = vmatpush1.msra.mxu0 0.0
    %1346 = vmatprep.subr.mxu0 0.0
    %1347 = vmatpush1.msra.mxu0 0.0
    %1348 = vmatprep.subr.mxu0 0.0
    %1349 = vmatpush1.msra.mxu0 0.0
    %1350 = vmatprep.subr.mxu0 0.0
    %1351 = vmatpush1.msra.mxu0 0.0
    %1352 = vmatprep.subr.mxu0 0.0
    %1353 = vmatpush1.msra.mxu0 0.0
    %1354 = vmatprep.subr.mxu0 0.0
    %1355 = vmatpush1.msra.mxu0 0.0
    %1356 = vmatprep.subr.mxu0 0.0
    %1357 = vmatpush1.msra.mxu0 0.0
    %1358 = vmatprep.subr.mxu0 0.0
    %1359 = vmatpush1.msra.mxu0 0.0
    %1360 = vmatprep.subr.mxu0 0.0
    %1361 = vmatpush1.msra.mxu0 0.0
    %1362 = vmatprep.subr.mxu0 0.0
    %1363 = vmatpush1.msra.mxu0 0.0
    %1364 = vmatprep.subr.mxu0 0.0
    %1365 = vmatpush1.msra.mxu0 0.0
    %1366 = vmatprep.subr.mxu0 0.0
    %1367 = vmatpush1.msra.mxu0 0.0
    %1368 = vmatprep.mubr.f32.mxu0 0.0
    %1369 = vmatmul.mubr.f32.gmra.mrb[0].mxu0 %v1302
    %v1370 = vpop.f32.mrb[0].mxu0
    %v1371 = vadd.f32 0.0, %v1370
    %v1372 = vpop.f32.mrb[0].mxu0
    %1373 = vdwg.mxu0
    %v1374 = vadd.f32 %v1301, %v1371
    %v1375 = vld [vmem:[%s667 + $0x8] sm:$0xff]
    %v1376 = vsel %vm242, %v1297, 0
    %1378 = vmatprep.subr.mxu0 0.0
    %1379 = vmatpush1.msra.mxu0 %v232
    %1380 = vmatprep.subr.mxu0 0.0
    %1381 = vmatpush1.msra.mxu0 %v233
    %1382 = vmatprep.subr.mxu0 0.0
    %1383 = vmatpush1.msra.mxu0 %v234
    %1384 = vmatprep.subr.mxu0 0.0
    %1385 = vmatpush1.msra.mxu0 %v235
    %1386 = vmatprep.subr.mxu0 0.0
    %1387 = vmatpush1.msra.mxu0 0.0
    %1388 = vmatprep.subr.mxu0 0.0
    %1389 = vmatpush1.msra.mxu0 0.0
    %1390 = vmatprep.subr.mxu0 0.0
    %1391 = vmatpush1.msra.mxu0 0.0
    %1392 = vmatprep.subr.mxu0 0.0
    %1393 = vmatpush1.msra.mxu0 0.0
    %1394 = vmatprep.subr.mxu0 0.0
    %1395 = vmatpush1.msra.mxu0 0.0
    %1396 = vmatprep.subr.mxu0 0.0
    %1397 = vmatpush1.msra.mxu0 0.0
    %1398 = vmatprep.subr.mxu0 0.0
    %1399 = vmatpush1.msra.mxu0 0.0
    %1400 = vmatprep.subr.mxu0 0.0
    %1401 = vmatpush1.msra.mxu0 0.0
    %1402 = vmatprep.subr.mxu0 0.0
    %1403 = vmatpush1.msra.mxu0 0.0
    %1404 = vmatprep.subr.mxu0 0.0
    %1405 = vmatpush1.msra.mxu0 0.0
    %1406 = vmatprep.subr.mxu0 0.0
    %1407 = vmatpush1.msra.mxu0 0.0
    %1408 = vmatprep.subr.mxu0 0.0
    %1409 = vmatpush1.msra.mxu0 0.0
    %1410 = vmatprep.subr.mxu0 0.0
    %1411 = vmatpush1.msra.mxu0 0.0
    %1412 = vmatprep.subr.mxu0 0.0
    %1413 = vmatpush1.msra.mxu0 0.0
    %1414 = vmatprep.subr.mxu0 0.0
    %1415 = vmatpush1.msra.mxu0 0.0
    %1416 = vmatprep.subr.mxu0 0.0
    %1417 = vmatpush1.msra.mxu0 0.0
    %1418 = vmatprep.subr.mxu0 0.0
    %1419 = vmatpush1.msra.mxu0 0.0
    %1420 = vmatprep.subr.mxu0 0.0
    %1421 = vmatpush1.msra.mxu0 0.0
    %1422 = vmatprep.subr.mxu0 0.0
    %1423 = vmatpush1.msra.mxu0 0.0
    %1424 = vmatprep.subr.mxu0 0.0
    %1425 = vmatpush1.msra.mxu0 0.0
    %1426 = vmatprep.subr.mxu0 0.0
    %1427 = vmatpush1.msra.mxu0 0.0
    %1428 = vmatprep.subr.mxu0 0.0
    %1429 = vmatpush1.msra.mxu0 0.0
    %1430 = vmatprep.subr.mxu0 0.0
    %1431 = vmatpush1.msra.mxu0 0.0
    %1432 = vmatprep.subr.mxu0 0.0
    %1433 = vmatpush1.msra.mxu0 0.0
    %1434 = vmatprep.subr.mxu0 0.0
    %1435 = vmatpush1.msra.mxu0 0.0
    %1436 = vmatprep.subr.mxu0 0.0
    %1437 = vmatpush1.msra.mxu0 0.0
    %1438 = vmatprep.subr.mxu0 0.0
    %1439 = vmatpush1.msra.mxu0 0.0
    %1440 = vmatprep.subr.mxu0 0.0
    %1441 = vmatpush1.msra.mxu0 0.0
    %1442 = vmatprep.mubr.f32.mxu0 0.0
    %1443 = vmatmul.mubr.f32.gmra.mrb[0].mxu0 %v1376
    %v1444 = vpop.f32.mrb[0].mxu0
    %v1445 = vadd.f32 0.0, %v1444
    %v1446 = vpop.f32.mrb[0].mxu0
    %1447 = vdwg.mxu0
    %v1448 = vadd.f32 %v1375, %v1445
    %v1449 = vxor.u32 %v1374, 2147483648
    %v1450 = vmul.f32 %v1449, 1.442695
    %v1451 = vpow.pop %v1450
    %v1452 = vadd.f32 %v1451, 1.0
    %v1453 = vrcp.pop %v1452
    %v1454 = vmul.f32 1.0, %v1453
    %v1455 = vmul.f32 %v1258, %v1454
    %v1456 = vtanh.pop %v1374
    %1458 = vrot.lane.b32.xlu0 %v1456, 96
    %v1459 = vpop.permute.xlu0 %1458
    %v1461 = vmul.f32 %v1454, %v1459
    %1463 = vrot.lane.b32.xlu0 %v1461, 96
    %v1464 = vpop.permute.xlu0 %1463
    %v1466 = vadd.f32 %v1455, %v1464
    %v1467 = vtanh.pop %v1466
    %1469 = vrot.lane.b32.xlu0 %v1467, 96
    %v1470 = vpop.permute.xlu0 %1469
    %v1472 = vmul.f32 %v1374, %v1470
    %v1473 = vxor.u32 %v1448, 2147483648
    %v1474 = vmul.f32 %v1473, 1.442695
    %v1475 = vpow.pop %v1474
    %v1476 = vadd.f32 %v1475, 1.0
    %v1477 = vrcp.pop %v1476
    %v1478 = vmul.f32 1.0, %v1477
    %v1479 = vmul.f32 %v1282, %v1478
    %v1480 = vtanh.pop %v1448
    %1482 = vrot.lane.b32.xlu0 %v1480, 96
    %v1483 = vpop.permute.xlu0 %1482
    %v1485 = vmul.f32 %v1478, %v1483
    %1487 = vrot.lane.b32.xlu0 %v1485, 96
    %v1488 = vpop.permute.xlu0 %1487
    %v1490 = vadd.f32 %v1479, %v1488
    %v1491 = vtanh.pop %v1490
    %1493 = vrot.lane.b32.xlu0 %v1491, 96
    %v1494 = vpop.permute.xlu0 %1493
    %v1496 = vmul.f32 %v1448, %v1494
    %1498 = vrot.lane.b32.xlu0 %v1472, 32
    %v1499 = vpop.permute.xlu0 %1498
    %s1501 = scalar_lea.vmem %s7, 40
    %1502 = vst.msk [vmem:[%s1501] sm:$0xff] %vm242, %v1499
    %1504 = vrot.lane.b32.xlu0 %v1496, 32
    %v1505 = vpop.permute.xlu0 %1504
    %s1507 = scalar_lea.vmem [#allocation3], 16
    %1508 = vst.msk [vmem:[%s1507] sm:$0xff] %vm242, %v1505
    %v1509 = vld [vmem:[%s530] sm:$0xff]
    %v1510 = vsel %vm242, %v1499, 0
    %1512 = vmatprep.subr.mxu0 0.0
    %1513 = vmatpush1.msra.mxu0 %v228
    %1514 = vmatprep.subr.mxu0 0.0
    %1515 = vmatpush1.msra.mxu0 %v229
    %1516 = vmatprep.subr.mxu0 0.0
    %1517 = vmatpush1.msra.mxu0 %v230
    %1518 = vmatprep.subr.mxu0 0.0
    %1519 = vmatpush1.msra.mxu0 %v231
    %1520 = vmatprep.subr.mxu0 0.0
    %1521 = vmatpush1.msra.mxu0 0.0
    %1522 = vmatprep.subr.mxu0 0.0
    %1523 = vmatpush1.msra.mxu0 0.0
    %1524 = vmatprep.subr.mxu0 0.0
    %1525 = vmatpush1.msra.mxu0 0.0
    %1526 = vmatprep.subr.mxu0 0.0
    %1527 = vmatpush1.msra.mxu0 0.0
    %1528 = vmatprep.subr.mxu0 0.0
    %1529 = vmatpush1.msra.mxu0 0.0
    %1530 = vmatprep.subr.mxu0 0.0
    %1531 = vmatpush1.msra.mxu0 0.0
    %1532 = vmatprep.subr.mxu0 0.0
    %1533 = vmatpush1.msra.mxu0 0.0
    %1534 = vmatprep.subr.mxu0 0.0
    %1535 = vmatpush1.msra.mxu0 0.0
    %1536 = vmatprep.subr.mxu0 0.0
    %1537 = vmatpush1.msra.mxu0 0.0
    %1538 = vmatprep.subr.mxu0 0.0
    %1539 = vmatpush1.msra.mxu0 0.0
    %1540 = vmatprep.subr.mxu0 0.0
    %1541 = vmatpush1.msra.mxu0 0.0
    %1542 = vmatprep.subr.mxu0 0.0
    %1543 = vmatpush1.msra.mxu0 0.0
    %1544 = vmatprep.subr.mxu0 0.0
    %1545 = vmatpush1.msra.mxu0 0.0
    %1546 = vmatprep.subr.mxu0 0.0
    %1547 = vmatpush1.msra.mxu0 0.0
    %1548 = vmatprep.subr.mxu0 0.0
    %1549 = vmatpush1.msra.mxu0 0.0
    %1550 = vmatprep.subr.mxu0 0.0
    %1551 = vmatpush1.msra.mxu0 0.0
    %1552 = vmatprep.subr.mxu0 0.0
    %1553 = vmatpush1.msra.mxu0 0.0
    %1554 = vmatprep.subr.mxu0 0.0
    %1555 = vmatpush1.msra.mxu0 0.0
    %1556 = vmatprep.subr.mxu0 0.0
    %1557 = vmatpush1.msra.mxu0 0.0
    %1558 = vmatprep.subr.mxu0 0.0
    %1559 = vmatpush1.msra.mxu0 0.0
    %1560 = vmatprep.subr.mxu0 0.0
    %1561 = vmatpush1.msra.mxu0 0.0
    %1562 = vmatprep.subr.mxu0 0.0
    %1563 = vmatpush1.msra.mxu0 0.0
    %1564 = vmatprep.subr.mxu0 0.0
    %1565 = vmatpush1.msra.mxu0 0.0
    %1566 = vmatprep.subr.mxu0 0.0
    %1567 = vmatpush1.msra.mxu0 0.0
    %1568 = vmatprep.subr.mxu0 0.0
    %1569 = vmatpush1.msra.mxu0 0.0
    %1570 = vmatprep.subr.mxu0 0.0
    %1571 = vmatpush1.msra.mxu0 0.0
    %1572 = vmatprep.subr.mxu0 0.0
    %1573 = vmatpush1.msra.mxu0 0.0
    %1574 = vmatprep.subr.mxu0 0.0
    %1575 = vmatpush1.msra.mxu0 0.0
    %1576 = vmatprep.mubr.f32.mxu0 0.0
    %1577 = vmatmul.mubr.f32.gmra.mrb[0].mxu0 %v1510
    %v1578 = vpop.f32.mrb[0].mxu0
    %v1579 = vadd.f32 0.0, %v1578
    %v1580 = vpop.f32.mrb[0].mxu0
    %1581 = vdwg.mxu0
    %v1582 = vadd.f32 %v1509, %v1579
    %v1583 = vld [vmem:[%s453 + $0x8] sm:$0xff]
    %v1584 = vsel %vm242, %v1505, 0
    %1586 = vmatprep.subr.mxu0 0.0
    %1587 = vmatpush1.msra.mxu0 %v232
    %1588 = vmatprep.subr.mxu0 0.0
    %1589 = vmatpush1.msra.mxu0 %v233
    %1590 = vmatprep.subr.mxu0 0.0
    %1591 = vmatpush1.msra.mxu0 %v234
    %1592 = vmatprep.subr.mxu0 0.0
    %1593 = vmatpush1.msra.mxu0 %v235
    %1594 = vmatprep.subr.mxu0 0.0
    %1595 = vmatpush1.msra.mxu0 0.0
    %1596 = vmatprep.subr.mxu0 0.0
    %1597 = vmatpush1.msra.mxu0 0.0
    %1598 = vmatprep.subr.mxu0 0.0
    %1599 = vmatpush1.msra.mxu0 0.0
    %1600 = vmatprep.subr.mxu0 0.0
    %1601 = vmatpush1.msra.mxu0 0.0
    %1602 = vmatprep.subr.mxu0 0.0
    %1603 = vmatpush1.msra.mxu0 0.0
    %1604 = vmatprep.subr.mxu0 0.0
    %1605 = vmatpush1.msra.mxu0 0.0
    %1606 = vmatprep.subr.mxu0 0.0
    %1607 = vmatpush1.msra.mxu0 0.0
    %1608 = vmatprep.subr.mxu0 0.0
    %1609 = vmatpush1.msra.mxu0 0.0
    %1610 = vmatprep.subr.mxu0 0.0
    %1611 = vmatpush1.msra.mxu0 0.0
    %1612 = vmatprep.subr.mxu0 0.0
    %1613 = vmatpush1.msra.mxu0 0.0
    %1614 = vmatprep.subr.mxu0 0.0
    %1615 = vmatpush1.msra.mxu0 0.0
    %1616 = vmatprep.subr.mxu0 0.0
    %1617 = vmatpush1.msra.mxu0 0.0
    %1618 = vmatprep.subr.mxu0 0.0
    %1619 = vmatpush1.msra.mxu0 0.0
    %1620 = vmatprep.subr.mxu0 0.0
    %1621 = vmatpush1.msra.mxu0 0.0
    %1622 = vmatprep.subr.mxu0 0.0
    %1623 = vmatpush1.msra.mxu0 0.0
    %1624 = vmatprep.subr.mxu0 0.0
    %1625 = vmatpush1.msra.mxu0 0.0
    %1626 = vmatprep.subr.mxu0 0.0
    %1627 = vmatpush1.msra.mxu0 0.0
    %1628 = vmatprep.subr.mxu0 0.0
    %1629 = vmatpush1.msra.mxu0 0.0
    %1630 = vmatprep.subr.mxu0 0.0
    %1631 = vmatpush1.msra.mxu0 0.0
    %1632 = vmatprep.subr.mxu0 0.0
    %1633 = vmatpush1.msra.mxu0 0.0
    %1634 = vmatprep.subr.mxu0 0.0
    %1635 = vmatpush1.msra.mxu0 0.0
    %1636 = vmatprep.subr.mxu0 0.0
    %1637 = vmatpush1.msra.mxu0 0.0
    %1638 = vmatprep.subr.mxu0 0.0
    %1639 = vmatpush1.msra.mxu0 0.0
    %1640 = vmatprep.subr.mxu0 0.0
    %1641 = vmatpush1.msra.mxu0 0.0
    %1642 = vmatprep.subr.mxu0 0.0
    %1643 = vmatpush1.msra.mxu0 0.0
    %1644 = vmatprep.subr.mxu0 0.0
    %1645 = vmatpush1.msra.mxu0 0.0
    %1646 = vmatprep.subr.mxu0 0.0
    %1647 = vmatpush1.msra.mxu0 0.0
    %1648 = vmatprep.subr.mxu0 0.0
    %1649 = vmatpush1.msra.mxu0 0.0
    %1650 = vmatprep.mubr.f32.mxu0 0.0
    %1651 = vmatmul.mubr.f32.gmra.mrb[0].mxu0 %v1584
    %v1652 = vpop.f32.mrb[0].mxu0
    %v1653 = vadd.f32 0.0, %v1652
    %v1654 = vpop.f32.mrb[0].mxu0
    %1655 = vdwg.mxu0
    %v1656 = vadd.f32 %v1583, %v1653
    %v1657 = vxor.u32 %v1582, 2147483648
    %v1658 = vmul.f32 %v1657, 1.442695
    %v1659 = vpow.pop %v1658
    %v1660 = vadd.f32 %v1659, 1.0
    %v1661 = vrcp.pop %v1660
    %v1662 = vmul.f32 1.0, %v1661
    %v1663 = vmul.f32 %v1466, %v1662
    %v1664 = vtanh.pop %v1582
    %1666 = vrot.lane.b32.xlu0 %v1664, 96
    %v1667 = vpop.permute.xlu0 %1666
    %v1669 = vmul.f32 %v1662, %v1667
    %1671 = vrot.lane.b32.xlu0 %v1669, 96
    %v1672 = vpop.permute.xlu0 %1671
    %v1674 = vadd.f32 %v1663, %v1672
    %v1675 = vtanh.pop %v1674
    %1677 = vrot.lane.b32.xlu0 %v1675, 96
    %v1678 = vpop.permute.xlu0 %1677
    %v1680 = vmul.f32 %v1582, %v1678
    %v1681 = vxor.u32 %v1656, 2147483648
    %v1682 = vmul.f32 %v1681, 1.442695
    %v1683 = vpow.pop %v1682
    %v1684 = vadd.f32 %v1683, 1.0
    %v1685 = vrcp.pop %v1684
    %v1686 = vmul.f32 1.0, %v1685
    %v1687 = vmul.f32 %v1490, %v1686
    %v1688 = vtanh.pop %v1656
    %1690 = vrot.lane.b32.xlu0 %v1688, 96
    %v1691 = vpop.permute.xlu0 %1690
    %v1693 = vmul.f32 %v1686, %v1691
    %1695 = vrot.lane.b32.xlu0 %v1693, 96
    %v1696 = vpop.permute.xlu0 %1695
    %v1698 = vadd.f32 %v1687, %v1696
    %v1699 = vtanh.pop %v1698
    %1701 = vrot.lane.b32.xlu0 %v1699, 96
    %v1702 = vpop.permute.xlu0 %1701
    %v1704 = vmul.f32 %v1656, %v1702
    %1706 = vrot.lane.b32.xlu0 %v1680, 32
    %v1707 = vpop.permute.xlu0 %1706
    %s1709 = scalar_lea.vmem %s7, 48
    %1710 = vst.msk [vmem:[%s1709] sm:$0xff] %vm242, %v1707
    %1712 = vrot.lane.b32.xlu0 %v1704, 32
    %v1713 = vpop.permute.xlu0 %1712
    %s1715 = scalar_lea.vmem [#allocation3], 8
    %1716 = vst.msk [vmem:[%s1715] sm:$0xff] %vm242, %v1713
    %v1717 = vld [vmem:[%s319] sm:$0xff]
    %v1718 = vsel %vm242, %v1707, 0
    %1720 = vmatprep.subr.mxu0 0.0
    %1721 = vmatpush1.msra.mxu0 %v228
    %1722 = vmatprep.subr.mxu0 0.0
    %1723 = vmatpush1.msra.mxu0 %v229
    %1724 = vmatprep.subr.mxu0 0.0
    %1725 = vmatpush1.msra.mxu0 %v230
    %1726 = vmatprep.subr.mxu0 0.0
    %1727 = vmatpush1.msra.mxu0 %v231
    %1728 = vmatprep.subr.mxu0 0.0
    %1729 = vmatpush1.msra.mxu0 0.0
    %1730 = vmatprep.subr.mxu0 0.0
    %1731 = vmatpush1.msra.mxu0 0.0
    %1732 = vmatprep.subr.mxu0 0.0
    %1733 = vmatpush1.msra.mxu0 0.0
    %1734 = vmatprep.subr.mxu0 0.0
    %1735 = vmatpush1.msra.mxu0 0.0
    %1736 = vmatprep.subr.mxu0 0.0
    %1737 = vmatpush1.msra.mxu0 0.0
    %1738 = vmatprep.subr.mxu0 0.0
    %1739 = vmatpush1.msra.mxu0 0.0
    %1740 = vmatprep.subr.mxu0 0.0
    %1741 = vmatpush1.msra.mxu0 0.0
    %1742 = vmatprep.subr.mxu0 0.0
    %1743 = vmatpush1.msra.mxu0 0.0
    %1744 = vmatprep.subr.mxu0 0.0
    %1745 = vmatpush1.msra.mxu0 0.0
    %1746 = vmatprep.subr.mxu0 0.0
    %1747 = vmatpush1.msra.mxu0 0.0
    %1748 = vmatprep.subr.mxu0 0.0
    %1749 = vmatpush1.msra.mxu0 0.0
    %1750 = vmatprep.subr.mxu0 0.0
    %1751 = vmatpush1.msra.mxu0 0.0
    %1752 = vmatprep.subr.mxu0 0.0
    %1753 = vmatpush1.msra.mxu0 0.0
    %1754 = vmatprep.subr.mxu0 0.0
    %1755 = vmatpush1.msra.mxu0 0.0
    %1756 = vmatprep.subr.mxu0 0.0
    %1757 = vmatpush1.msra.mxu0 0.0
    %1758 = vmatprep.subr.mxu0 0.0
    %1759 = vmatpush1.msra.mxu0 0.0
    %1760 = vmatprep.subr.mxu0 0.0
    %1761 = vmatpush1.msra.mxu0 0.0
    %1762 = vmatprep.subr.mxu0 0.0
    %1763 = vmatpush1.msra.mxu0 0.0
    %1764 = vmatprep.subr.mxu0 0.0
    %1765 = vmatpush1.msra.mxu0 0.0
    %1766 = vmatprep.subr.mxu0 0.0
    %1767 = vmatpush1.msra.mxu0 0.0
    %1768 = vmatprep.subr.mxu0 0.0
    %1769 = vmatpush1.msra.mxu0 0.0
    %1770 = vmatprep.subr.mxu0 0.0
    %1771 = vmatpush1.msra.mxu0 0.0
    %1772 = vmatprep.subr.mxu0 0.0
    %1773 = vmatpush1.msra.mxu0 0.0
    %1774 = vmatprep.subr.mxu0 0.0
    %1775 = vmatpush1.msra.mxu0 0.0
    %1776 = vmatprep.subr.mxu0 0.0
    %1777 = vmatpush1.msra.mxu0 0.0
    %1778 = vmatprep.subr.mxu0 0.0
    %1779 = vmatpush1.msra.mxu0 0.0
    %1780 = vmatprep.subr.mxu0 0.0
    %1781 = vmatpush1.msra.mxu0 0.0
    %1782 = vmatprep.subr.mxu0 0.0
    %1783 = vmatpush1.msra.mxu0 0.0
    %1784 = vmatprep.mubr.f32.mxu0 0.0
    %1785 = vmatmul.mubr.f32.gmra.mrb[0].mxu0 %v1718
    %v1786 = vpop.f32.mrb[0].mxu0
    %v1787 = vadd.f32 0.0, %v1786
    %v1788 = vpop.f32.mrb[0].mxu0
    %1789 = vdwg.mxu0
    %v1790 = vadd.f32 %v1717, %v1787
    %v1791 = vld [vmem:[%s240 + $0x8] sm:$0xff]
    %v1792 = vsel %vm242, %v1713, 0
    %1794 = vmatprep.subr.mxu0 0.0
    %1795 = vmatpush1.msra.mxu0 %v232
    %1796 = vmatprep.subr.mxu0 0.0
    %1797 = vmatpush1.msra.mxu0 %v233
    %1798 = vmatprep.subr.mxu0 0.0
    %1799 = vmatpush1.msra.mxu0 %v234
    %1800 = vmatprep.subr.mxu0 0.0
    %1801 = vmatpush1.msra.mxu0 %v235
    %1802 = vmatprep.subr.mxu0 0.0
    %1803 = vmatpush1.msra.mxu0 0.0
    %1804 = vmatprep.subr.mxu0 0.0
    %1805 = vmatpush1.msra.mxu0 0.0
    %1806 = vmatprep.subr.mxu0 0.0
    %1807 = vmatpush1.msra.mxu0 0.0
    %1808 = vmatprep.subr.mxu0 0.0
    %1809 = vmatpush1.msra.mxu0 0.0
    %1810 = vmatprep.subr.mxu0 0.0
    %1811 = vmatpush1.msra.mxu0 0.0
    %1812 = vmatprep.subr.mxu0 0.0
    %1813 = vmatpush1.msra.mxu0 0.0
    %1814 = vmatprep.subr.mxu0 0.0
    %1815 = vmatpush1.msra.mxu0 0.0
    %1816 = vmatprep.subr.mxu0 0.0
    %1817 = vmatpush1.msra.mxu0 0.0
    %1818 = vmatprep.subr.mxu0 0.0
    %1819 = vmatpush1.msra.mxu0 0.0
    %1820 = vmatprep.subr.mxu0 0.0
    %1821 = vmatpush1.msra.mxu0 0.0
    %1822 = vmatprep.subr.mxu0 0.0
    %1823 = vmatpush1.msra.mxu0 0.0
    %1824 = vmatprep.subr.mxu0 0.0
    %1825 = vmatpush1.msra.mxu0 0.0
    %1826 = vmatprep.subr.mxu0 0.0
    %1827 = vmatpush1.msra.mxu0 0.0
    %1828 = vmatprep.subr.mxu0 0.0
    %1829 = vmatpush1.msra.mxu0 0.0
    %1830 = vmatprep.subr.mxu0 0.0
    %1831 = vmatpush1.msra.mxu0 0.0
    %1832 = vmatprep.subr.mxu0 0.0
    %1833 = vmatpush1.msra.mxu0 0.0
    %1834 = vmatprep.subr.mxu0 0.0
    %1835 = vmatpush1.msra.mxu0 0.0
    %1836 = vmatprep.subr.mxu0 0.0
    %1837 = vmatpush1.msra.mxu0 0.0
    %1838 = vmatprep.subr.mxu0 0.0
    %1839 = vmatpush1.msra.mxu0 0.0
    %1840 = vmatprep.subr.mxu0 0.0
    %1841 = vmatpush1.msra.mxu0 0.0
    %1842 = vmatprep.subr.mxu0 0.0
    %1843 = vmatpush1.msra.mxu0 0.0
    %1844 = vmatprep.subr.mxu0 0.0
    %1845 = vmatpush1.msra.mxu0 0.0
    %1846 = vmatprep.subr.mxu0 0.0
    %1847 = vmatpush1.msra.mxu0 0.0
    %1848 = vmatprep.subr.mxu0 0.0
    %1849 = vmatpush1.msra.mxu0 0.0
    %1850 = vmatprep.subr.mxu0 0.0
    %1851 = vmatpush1.msra.mxu0 0.0
    %1852 = vmatprep.subr.mxu0 0.0
    %1853 = vmatpush1.msra.mxu0 0.0
    %1854 = vmatprep.subr.mxu0 0.0
    %1855 = vmatpush1.msra.mxu0 0.0
    %1856 = vmatprep.subr.mxu0 0.0
    %1857 = vmatpush1.msra.mxu0 0.0
    %1858 = vmatprep.mubr.f32.mxu0 0.0
    %1859 = vmatmul.mubr.f32.gmra.mrb[0].mxu0 %v1792
    %v1860 = vpop.f32.mrb[0].mxu0
    %v1861 = vadd.f32 0.0, %v1860
    %v1862 = vpop.f32.mrb[0].mxu0
    %1863 = vdwg.mxu0
    %v1864 = vadd.f32 %v1791, %v1861
    %v1865 = vxor.u32 %v1790, 2147483648
    %v1866 = vmul.f32 %v1865, 1.442695
    %v1867 = vpow.pop %v1866
    %v1868 = vadd.f32 %v1867, 1.0
    %v1869 = vrcp.pop %v1868
    %v1870 = vmul.f32 1.0, %v1869
    %v1871 = vmul.f32 %v1674, %v1870
    %v1872 = vtanh.pop %v1790
    %1874 = vrot.lane.b32.xlu0 %v1872, 96
    %v1875 = vpop.permute.xlu0 %1874
    %v1877 = vmul.f32 %v1870, %v1875
    %1879 = vrot.lane.b32.xlu0 %v1877, 96
    %v1880 = vpop.permute.xlu0 %1879
    %v1882 = vadd.f32 %v1871, %v1880
    %v1883 = vtanh.pop %v1882
    %1885 = vrot.lane.b32.xlu0 %v1883, 96
    %v1886 = vpop.permute.xlu0 %1885
    %v1888 = vmul.f32 %v1790, %v1886
    %v1889 = vxor.u32 %v1864, 2147483648
    %v1890 = vmul.f32 %v1889, 1.442695
    %v1891 = vpow.pop %v1890
    %v1892 = vadd.f32 %v1891, 1.0
    %v1893 = vrcp.pop %v1892
    %v1894 = vmul.f32 1.0, %v1893
    %v1895 = vmul.f32 %v1698, %v1894
    %v1896 = vtanh.pop %v1864
    %1898 = vrot.lane.b32.xlu0 %v1896, 96
    %v1899 = vpop.permute.xlu0 %1898
    %v1901 = vmul.f32 %v1894, %v1899
    %1903 = vrot.lane.b32.xlu0 %v1901, 96
    %v1904 = vpop.permute.xlu0 %1903
    %v1906 = vadd.f32 %v1895, %v1904
    %v1907 = vtanh.pop %v1906
    %1909 = vrot.lane.b32.xlu0 %v1907, 96
    %v1910 = vpop.permute.xlu0 %1909
    %v1912 = vmul.f32 %v1864, %v1910
    %1914 = vrot.lane.b32.xlu0 %v1888, 32
    %v1915 = vpop.permute.xlu0 %1914
    %s1917 = scalar_lea.vmem %s7, 56
    %1918 = vst.msk [vmem:[%s1917] sm:$0xff] %vm242, %v1915
    %1920 = vrot.lane.b32.xlu0 %v1912, 32
    %v1921 = vpop.permute.xlu0 %1920
    %1923 = vst.msk [vmem:[#allocation3] sm:$0xff] %vm242, %v1921
    %v1924 = vld [vmem:[%s7] sm:$0xff]
    %v1925 = vld [vmem:[%s7 + $0x8] sm:$0xff]
    %v1926 = vld [vmem:[%s7 + $0x10] sm:$0xff]
    %v1927 = vld [vmem:[%s7 + $0x18] sm:$0xff]
    %v1928 = vld [vmem:[%s7 + $0x20] sm:$0xff]
    %v1929 = vld [vmem:[%s7 + $0x28] sm:$0xff]
    %v1930 = vld [vmem:[%s7 + $0x30] sm:$0xff]
    %v1931 = vld [vmem:[%s7 + $0x38] sm:$0xff]
    %v1932 = vld [vmem:[#allocation3] sm:$0xff]
    %v1933 = vld [vmem:[#allocation3 + $0x8] sm:$0xff]
    %v1934 = vld [vmem:[#allocation3 + $0x10] sm:$0xff]
    %v1935 = vld [vmem:[#allocation3 + $0x18] sm:$0xff]
    %v1936 = vld [vmem:[#allocation3 + $0x20] sm:$0xff]
    %v1937 = vld [vmem:[#allocation3 + $0x28] sm:$0xff]
    %v1938 = vld [vmem:[#allocation3 + $0x30] sm:$0xff]
    %v1939 = vld [vmem:[#allocation3 + $0x38] sm:$0xff]
    %v1940 = vadd.f32 %v1924, %v1932
    %v1941 = vadd.f32 %v1925, %v1933
    %v1942 = vadd.f32 %v1926, %v1934
    %v1943 = vadd.f32 %v1927, %v1935
    %v1944 = vadd.f32 %v1928, %v1936
    %v1945 = vadd.f32 %v1929, %v1937
    %v1946 = vadd.f32 %v1930, %v1938
    %v1947 = vadd.f32 %v1931, %v1939
    %1948 = vst.msk [vmem:[%s7] sm:$0xff] %vm242, %v1940
    %1949 = vst.msk [vmem:[%s7 + $0x8] sm:$0xff] %vm242, %v1941
    %1950 = vst.msk [vmem:[%s7 + $0x10] sm:$0xff] %vm242, %v1942
    %1951 = vst.msk [vmem:[%s7 + $0x18] sm:$0xff] %vm242, %v1943
    %1952 = vst.msk [vmem:[%s7 + $0x20] sm:$0xff] %vm242, %v1944
    %1953 = vst.msk [vmem:[%s7 + $0x28] sm:$0xff] %vm242, %v1945
    %1954 = vst.msk [vmem:[%s7 + $0x30] sm:$0xff] %vm242, %v1946
    %1955 = vst.msk [vmem:[%s7 + $0x38] sm:$0xff] %vm242, %v1947
    // Predicated region
    $region38: #{tpu_custom_call.1} parent=1 // pred_check
      _
    $region39: #{tpu_custom_call.1} parent=1 // pred_check_branch
      %1957 = sbr.rel (0) target = $region41
    $region40: #{tpu_custom_call.1} parent=1 // pred_region
      _
    $region41: #{tpu_custom_call.1} parent=1 // pred_fallthru
      _
    // Predicated region
    $region42: #{tpu_custom_call.1} parent=1 // pred_check
      _
    $region43: #{tpu_custom_call.1} parent=1 // pred_check_branch
      %1959 = sbr.rel (0) target = $region45
    $region44: #{tpu_custom_call.1} parent=1 // pred_region
      _
    $region45: #{tpu_custom_call.1} parent=1 // pred_fallthru
      _
    %1960 = vsyncpa [#allocation5], 1
    %1961 = vsyncpa [#allocation7], 1

</llo_original>
